<compile_context>
chip_gen: v7x
topology: tpu7x:2x2x1
jax: 0.10.0
libtpu: 0.0.40
codegen_flags: <defaults>
</compile_context>

<pallas_src>
import functools

import numpy as np
import jax
import jax.numpy as jnp
from jax.experimental import pallas as pl
from jax.experimental.pallas import tpu as pltpu

_LANE = 128


def _round_up(x, m):
    return (x + m - 1) // m * m


def _neg_max_cross_corr_kernel(min_n, band_lo, band_cols,
                               sig_ref, fwd_ref, mask_ref, inv_ref, out_ref):
    """sig_ref: (2B, T) = [preds; labels].  Writes per-sample corr as (1, B)."""
    sig = sig_ref[...]
    two_b, T = sig.shape
    B = two_b // 2

    # mean removal along time (shared by the cross-cov and the std denominator)
    cen = sig - jnp.mean(sig, axis=-1, keepdims=True)
    p_cen = cen[:B]
    l_cen = cen[B:]

    # unbiased std product (torch.std default, ddof=1)
    p_sq = jnp.sum(p_cen * p_cen, axis=-1)                  # (B,)
    l_sq = jnp.sum(l_cen * l_cen, axis=-1)                  # (B,)
    std_prod = jnp.sqrt(p_sq * l_sq) * (1.0 / float(T - 1))

    # fused forward rfft: one MXU matmul covers preds & labels, real & imag
    fwd = fwd_ref[...]                                      # (T, 2*Kp)
    Kp = fwd.shape[-1] // 2
    f = jnp.dot(cen, fwd, preferred_element_type=jnp.float32)   # (2B, 2*Kp)
    re = f[:, :Kp]
    ni = f[:, Kp:]                                          # = -imag (sin half)
    p_re, l_re = re[:B], re[B:]
    p_ni, l_ni = ni[:B], ni[B:]

    # X = preds_fft * conj(labels_fft)
    x_re = p_re * l_re + p_ni * l_ni
    x_im = p_re * l_ni - p_ni * l_re

    # energy ratio between pass-band and full spectrum (padded columns are 0)
    mask = mask_ref[...]                                    # (1, Kp)
    mag = jnp.sqrt(x_re * x_re + x_im * x_im)
    use_e = jnp.sum(mag * mask, axis=-1)                    # (B,)
    tot_e = jnp.sum(mag, axis=-1)                           # (B,) use + zero
    energy_ratio = jnp.where(
        tot_e > 0.0, use_e / jnp.where(tot_e > 0.0, tot_e, 1.0), 1.0)

    # band-limited irfft: out-of-band rows of inv_ref are zero, so the fused
    # (B, 2*KB) @ (2*KB, N) dot is exactly irfft(X * use_mask).
    xb = jnp.concatenate(
        [x_re[:, band_lo:band_lo + band_cols],
         x_im[:, band_lo:band_lo + band_cols]], axis=-1)    # (B, 2*KB)
    cc = jnp.dot(xb, inv_ref[...], preferred_element_type=jnp.float32)
    cc = cc * (1.0 / float(min_n - 1))                      # (B, N)
    max_cc = jnp.max(cc, axis=-1) / energy_ratio            # (B,)

    # NegativeMaxCrossCov -> NegativeMaxCrossCorr (divide by std product)
    neg_max_cc = -max_cc
    corr = jnp.where(std_prod > 0.0,
                     neg_max_cc / jnp.where(std_prod > 0.0, std_prod, 1.0),
                     jnp.zeros_like(neg_max_cc))
    out_ref[...] = corr[None, :]                            # lane-dense (1, B)


@functools.lru_cache(maxsize=None)
def _dft_constants(T, Fs, high_pass, low_pass):
    """Build (once per config) the DFT matrices / masks used by the kernel."""
    min_n = T
    padded_n = 2 * T
    N = 8 * padded_n
    K = N // 2 + 1
    K_pad = _round_up(K, _LANE)

    t = np.arange(T, dtype=np.float64)[:, None]
    k = np.arange(K_pad, dtype=np.float64)[None, :]
    valid = (np.arange(K_pad) < K).astype(np.float64)[None, :]
    ang = 2.0 * np.pi * t * k / N
    # hstack cos|sin: forward pass is one matmul; the sin half is "-imag".
    fwd = np.concatenate([np.cos(ang) * valid, np.sin(ang) * valid],
                         axis=1).astype(np.float32)         # (T, 2*K_pad)

    freqs = np.arange(K_pad) / N * Fs                       # rfftfreq(N) * Fs
    use = ((freqs <= high_pass / 60.0) & (freqs >= low_pass / 60.0)
           & (np.arange(K_pad) < K))
    use_mask = use.astype(np.float32)[None, :]              # (1, K_pad)

    band_idx = np.nonzero(use)[0]
    k_lo, k_hi = int(band_idx[0]), int(band_idx[-1])
    band_lo = (k_lo // _LANE) * _LANE                       # lane-aligned slice
    band_cols = _round_up(k_hi + 1 - band_lo, _LANE)

    # band-limited inverse-rfft matrices; zero rows for out-of-band bins so no
    # extra masking is needed in-kernel.  Hermitian weights: 1 at DC/Nyquist,
    # 2 elsewhere.
    n_ = np.arange(N, dtype=np.float64)[None, :]
    kb = (band_lo + np.arange(band_cols, dtype=np.float64))[:, None]
    w = np.where((kb == 0) | (kb == K - 1), 1.0, 2.0)
    in_band = use[band_lo:band_lo + band_cols].astype(np.float64)[:, None]
    ang_inv = 2.0 * np.pi * kb * n_ / N
    inv = np.concatenate([in_band * w * np.cos(ang_inv) / N,
                          -in_band * w * np.sin(ang_inv) / N],
                         axis=0).astype(np.float32)         # (2*band_cols, N)

    return (min_n, band_lo, band_cols,
            jnp.asarray(fwd), jnp.asarray(use_mask), jnp.asarray(inv))


def negative_max_cross_corr(preds, labels,
                            Fs=10.0, high_pass=30.0, low_pass=6.0):
    """Pallas implementation of NegativeMaxCrossCorr.forward (scalar mean)."""
    preds = preds.astype(jnp.float32)
    labels = labels.astype(jnp.float32)
    B, T = preds.shape
    assert labels.shape == (B, T), "kernel assumes equal-length preds/labels"

    (min_n, band_lo, band_cols,
     fwd, use_mask, inv) = _dft_constants(T, float(Fs), float(high_pass),
                                          float(low_pass))

    sig = jnp.concatenate([preds, labels], axis=0)          # (2B, T) fused LHS

    kernel = functools.partial(_neg_max_cross_corr_kernel,
                               min_n, band_lo, band_cols)

    def _spec(x):
        nd = x.ndim
        return pl.BlockSpec(x.shape, lambda i, nd=nd: (0,) * nd)

    # TODO(synk): for much larger B, grid over the batch dim marked "parallel"
    # so v7x can shard across its two TensorCores; for much larger T, keep
    # `inv` in HBM (pl.ANY) and stream it with pltpu.emit_pipeline.
    corr = pl.pallas_call(
        kernel,
        out_shape=jax.ShapeDtypeStruct((1, B), jnp.float32),
        grid=(1,),
        in_specs=[_spec(x) for x in (sig, fwd, use_mask, inv)],
        out_specs=pl.BlockSpec((1, B), lambda i: (0, 0)),
        compiler_params=pltpu.CompilerParams(
            dimension_semantics=("arbitrary",)),
    )(sig, fwd, use_mask, inv)

    return jnp.mean(corr)                                   # output.mean()


def reference(preds, labels, Fs=10.0, high_pass=30.0, low_pass=6.0):
    """Pure-JAX reference mirroring the PyTorch NegativeMaxCrossCorr forward."""
    pn = preds - jnp.mean(preds, -1, keepdims=True)
    ln = labels - jnp.mean(labels, -1, keepdims=True)
    min_N = min(preds.shape[-1], labels.shape[-1])
    padded_N = max(preds.shape[-1], labels.shape[-1]) * 2
    pp = jnp.pad(pn, ((0, 0), (0, padded_N - preds.shape[-1])))
    lp = jnp.pad(ln, ((0, 0), (0, padded_N - labels.shape[-1])))
    N = 8 * padded_N
    pf = jnp.fft.rfft(pp, n=N, axis=-1)
    lf = jnp.fft.rfft(lp, n=N, axis=-1)
    X = pf * jnp.conj(lf)
    freqs = jnp.fft.rfftfreq(N) * Fs
    use = (freqs <= high_pass / 60.0) & (freqs >= low_pass / 60.0)
    mag = jnp.abs(X)
    use_e = jnp.sum(jnp.where(use, mag, 0.0), -1)
    zero_e = jnp.sum(jnp.where(use, 0.0, mag), -1)
    denom_e = use_e + zero_e
    ratio = jnp.where(denom_e > 0.0, use_e / denom_e, 1.0)
    Xz = jnp.where(use, X, 0.0)
    cc = jnp.fft.irfft(Xz, axis=-1) / (min_N - 1)
    max_cc = jnp.max(cc, -1) / ratio
    cov = -max_cc                                            # NegativeMaxCrossCov
    denom = jnp.std(preds, -1, ddof=1) * jnp.std(labels, -1, ddof=1)
    out = jnp.where(denom > 0.0, cov / denom, jnp.zeros_like(cov))
    return jnp.mean(out)


if __name__ == "__main__":
    key = jax.random.PRNGKey(0)
    k1, k2 = jax.random.split(key)
    B, T = 4, 64
    preds = jax.random.normal(k1, (B, T), jnp.float32)
    labels = jax.random.normal(k2, (B, T), jnp.float32)

    out = negative_max_cross_corr(preds, labels)
    out = jax.block_until_ready(out)

    ref = reference(preds, labels)
    assert out.shape == ()
    assert bool(jnp.isfinite(out))
    assert jnp.allclose(out, ref, rtol=5e-3, atol=5e-3), (out, ref)
    print("KERNEL_OK")
</pallas_src>

<mosaic_0001>
module attributes {stable_mosaic.version = 11 : i64} {
  func.func @_neg_max_cross_corr_kernel(%arg0: i32, %arg1: memref<8x64xf32, #tpu.memory_space<vmem>>, %arg2: memref<64x1280xf32, #tpu.memory_space<vmem>>, %arg3: memref<1x640xf32, #tpu.memory_space<vmem>>, %arg4: memref<256x1024xf32, #tpu.memory_space<vmem>>, %arg5: memref<1x4xf32, #tpu.memory_space<vmem>>) attributes {dimension_semantics = [#tpu.dimension_semantics<arbitrary>], iteration_bounds = array<i64: 1>, scalar_prefetch = 0 : i64, scratch_operands = 0 : i64, tpu.core_type = #tpu.core_type<tc>, window_params = [{pipeline_mode = #tpu.pipeline_mode<synchronous>, transform_indices = @transform_0, window_bounds = array<i64: 8, 64>}, {pipeline_mode = #tpu.pipeline_mode<synchronous>, transform_indices = @transform_1, window_bounds = array<i64: 64, 1280>}, {pipeline_mode = #tpu.pipeline_mode<synchronous>, transform_indices = @transform_2, window_bounds = array<i64: 1, 640>}, {pipeline_mode = #tpu.pipeline_mode<synchronous>, transform_indices = @transform_3, window_bounds = array<i64: 256, 1024>}, {pipeline_mode = #tpu.pipeline_mode<synchronous>, transform_indices = @transform_4, window_bounds = array<i64: 1, 4>}]} {
    %c0 = arith.constant 0 : index
    %c0_0 = arith.constant 0 : index
    %0 = vector.load %arg1[%c0, %c0_0] : memref<8x64xf32, #tpu.memory_space<vmem>>, vector<8x64xf32>
    %cst = arith.constant dense<0.000000e+00> : vector<8xf32>
    %1 = vector.multi_reduction <add>, %0, %cst [1] : vector<8x64xf32> to vector<8xf32>
    %2 = vector.shape_cast %1 : vector<8xf32> to vector<8x1xf32>
    %cst_1 = arith.constant 6.400000e+01 : f32
    %3 = vector.broadcast %cst_1 : f32 to vector<8x1xf32>
    %4 = arith.divf %2, %3 : vector<8x1xf32>
    %5 = vector.broadcast %4 : vector<8x1xf32> to vector<8x64xf32>
    %6 = arith.subf %0, %5 : vector<8x64xf32>
    %7 = vector.extract_strided_slice %6 {offsets = [0, 0], sizes = [4, 64], strides = [1, 1]} : vector<8x64xf32> to vector<4x64xf32>
    %8 = vector.extract_strided_slice %6 {offsets = [4, 0], sizes = [4, 64], strides = [1, 1]} : vector<8x64xf32> to vector<4x64xf32>
    %9 = arith.mulf %7, %7 : vector<4x64xf32>
    %cst_2 = arith.constant dense<0.000000e+00> : vector<4xf32>
    %10 = vector.multi_reduction <add>, %9, %cst_2 [1] : vector<4x64xf32> to vector<4xf32>
    %11 = arith.mulf %8, %8 : vector<4x64xf32>
    %cst_3 = arith.constant dense<0.000000e+00> : vector<4xf32>
    %12 = vector.multi_reduction <add>, %11, %cst_3 [1] : vector<4x64xf32> to vector<4xf32>
    %13 = arith.mulf %10, %12 : vector<4xf32>
    %14 = math.sqrt %13 : vector<4xf32>
    %cst_4 = arith.constant 0.0158730168 : f32
    %15 = vector.broadcast %cst_4 : f32 to vector<4xf32>
    %16 = arith.mulf %14, %15 : vector<4xf32>
    %c0_5 = arith.constant 0 : index
    %c0_6 = arith.constant 0 : index
    %17 = vector.load %arg2[%c0_5, %c0_6] : memref<64x1280xf32, #tpu.memory_space<vmem>>, vector<64x1280xf32>
    %cst_7 = arith.constant dense<0.000000e+00> : vector<8x1280xf32>
    %18 = tpu.matmul %6, %17, %cst_7 {dimension_numbers = #tpu.dot_dimension_numbers<[1], [0], [0], [1], [0, 0, 1, 1], [], []>} : vector<8x64xf32>, vector<64x1280xf32>, vector<8x1280xf32> -> vector<8x1280xf32>
    %19 = vector.extract_strided_slice %18 {offsets = [0, 0], sizes = [8, 640], strides = [1, 1]} : vector<8x1280xf32> to vector<8x640xf32>
    %20 = vector.extract_strided_slice %18 {offsets = [0, 640], sizes = [8, 640], strides = [1, 1]} : vector<8x1280xf32> to vector<8x640xf32>
    %21 = vector.extract_strided_slice %19 {offsets = [0, 0], sizes = [4, 640], strides = [1, 1]} : vector<8x640xf32> to vector<4x640xf32>
    %22 = vector.extract_strided_slice %19 {offsets = [4, 0], sizes = [4, 640], strides = [1, 1]} : vector<8x640xf32> to vector<4x640xf32>
    %23 = vector.extract_strided_slice %20 {offsets = [0, 0], sizes = [4, 640], strides = [1, 1]} : vector<8x640xf32> to vector<4x640xf32>
    %24 = vector.extract_strided_slice %20 {offsets = [4, 0], sizes = [4, 640], strides = [1, 1]} : vector<8x640xf32> to vector<4x640xf32>
    %25 = arith.mulf %21, %22 : vector<4x640xf32>
    %26 = arith.mulf %23, %24 : vector<4x640xf32>
    %27 = arith.addf %25, %26 : vector<4x640xf32>
    %28 = arith.mulf %21, %24 : vector<4x640xf32>
    %29 = arith.mulf %23, %22 : vector<4x640xf32>
    %30 = arith.subf %28, %29 : vector<4x640xf32>
    %c0_8 = arith.constant 0 : index
    %c0_9 = arith.constant 0 : index
    %31 = vector.load %arg3[%c0_8, %c0_9] : memref<1x640xf32, #tpu.memory_space<vmem>>, vector<1x640xf32>
    %32 = arith.mulf %27, %27 : vector<4x640xf32>
    %33 = arith.mulf %30, %30 : vector<4x640xf32>
    %34 = arith.addf %32, %33 : vector<4x640xf32>
    %35 = math.sqrt %34 : vector<4x640xf32>
    %36 = vector.broadcast %31 : vector<1x640xf32> to vector<4x640xf32>
    %37 = arith.mulf %35, %36 : vector<4x640xf32>
    %cst_10 = arith.constant dense<0.000000e+00> : vector<4xf32>
    %38 = vector.multi_reduction <add>, %37, %cst_10 [1] : vector<4x640xf32> to vector<4xf32>
    %cst_11 = arith.constant dense<0.000000e+00> : vector<4xf32>
    %39 = vector.multi_reduction <add>, %35, %cst_11 [1] : vector<4x640xf32> to vector<4xf32>
    %cst_12 = arith.constant 0.000000e+00 : f32
    %40 = vector.broadcast %cst_12 : f32 to vector<4xf32>
    %41 = arith.cmpf ogt, %39, %40 : vector<4xf32>
    %cst_13 = arith.constant 0.000000e+00 : f32
    %42 = vector.broadcast %cst_13 : f32 to vector<4xf32>
    %43 = arith.cmpf ogt, %39, %42 : vector<4xf32>
    %cst_14 = arith.constant 1.000000e+00 : f32
    %44 = vector.broadcast %cst_14 : f32 to vector<4xf32>
    %45 = arith.select %43, %39, %44 : vector<4xi1>, vector<4xf32>
    %46 = arith.divf %38, %45 : vector<4xf32>
    %cst_15 = arith.constant 1.000000e+00 : f32
    %47 = vector.broadcast %cst_15 : f32 to vector<4xf32>
    %48 = arith.select %41, %46, %47 : vector<4xi1>, vector<4xf32>
    %49 = vector.extract_strided_slice %27 {offsets = [0, 0], sizes = [4, 128], strides = [1, 1]} : vector<4x640xf32> to vector<4x128xf32>
    %50 = vector.extract_strided_slice %30 {offsets = [0, 0], sizes = [4, 128], strides = [1, 1]} : vector<4x640xf32> to vector<4x128xf32>
    %51 = tpu.concatenate %49, %50 in 1 : vector<4x128xf32>, vector<4x128xf32> -> vector<4x256xf32>
    %c0_16 = arith.constant 0 : index
    %c0_17 = arith.constant 0 : index
    %52 = vector.load %arg4[%c0_16, %c0_17] : memref<256x1024xf32, #tpu.memory_space<vmem>>, vector<256x1024xf32>
    %cst_18 = arith.constant dense<0.000000e+00> : vector<4x1024xf32>
    %53 = tpu.matmul %51, %52, %cst_18 {dimension_numbers = #tpu.dot_dimension_numbers<[1], [0], [0], [1], [0, 0, 1, 1], [], []>} : vector<4x256xf32>, vector<256x1024xf32>, vector<4x1024xf32> -> vector<4x1024xf32>
    %cst_19 = arith.constant 0.0158730168 : f32
    %54 = vector.broadcast %cst_19 : f32 to vector<4x1024xf32>
    %55 = arith.mulf %53, %54 : vector<4x1024xf32>
    %cst_20 = arith.constant dense<0xFF800000> : vector<4xf32>
    %56 = vector.multi_reduction <maximumf>, %55, %cst_20 [1] : vector<4x1024xf32> to vector<4xf32>
    %57 = arith.divf %56, %48 : vector<4xf32>
    %cst_21 = arith.constant 0.000000e+00 : f32
    %58 = vector.broadcast %cst_21 : f32 to vector<4xf32>
    %59 = arith.subf %58, %57 : vector<4xf32>
    %cst_22 = arith.constant 0.000000e+00 : f32
    %60 = vector.broadcast %cst_22 : f32 to vector<4xf32>
    %61 = arith.cmpf ogt, %16, %60 : vector<4xf32>
    %cst_23 = arith.constant 0.000000e+00 : f32
    %62 = vector.broadcast %cst_23 : f32 to vector<4xf32>
    %63 = arith.cmpf ogt, %16, %62 : vector<4xf32>
    %cst_24 = arith.constant 1.000000e+00 : f32
    %64 = vector.broadcast %cst_24 : f32 to vector<4xf32>
    %65 = arith.select %63, %16, %64 : vector<4xi1>, vector<4xf32>
    %66 = arith.divf %59, %65 : vector<4xf32>
    %cst_25 = arith.constant 0.000000e+00 : f32
    %67 = vector.broadcast %cst_25 : f32 to vector<4xf32>
    %68 = arith.select %61, %66, %67 : vector<4xi1>, vector<4xf32>
    %69 = vector.shape_cast %68 : vector<4xf32> to vector<1x4xf32>
    %c0_26 = arith.constant 0 : index
    %c0_27 = arith.constant 0 : index
    %70 = vector.load %arg5[%c0_26, %c0_27] : memref<1x4xf32, #tpu.memory_space<vmem>>, vector<1x4xf32>
    tpu.vector_store %arg5[%c0_26, %c0_27], %69 {strides = array<i32>} : memref<1x4xf32, #tpu.memory_space<vmem>>, vector<1x4xf32>,
    return
  }
  func.func @transform_0(%arg0: i32) -> (i32, i32) {
    %c0_i32 = arith.constant 0 : i32
    %c0_i32_0 = arith.constant 0 : i32
    %c0_i32_1 = arith.constant 0 : i32
    return %c0_i32, %c0_i32_0 : i32, i32
  }
  func.func @transform_1(%arg0: i32) -> (i32, i32) {
    %c0_i32 = arith.constant 0 : i32
    %c0_i32_0 = arith.constant 0 : i32
    %c0_i32_1 = arith.constant 0 : i32
    return %c0_i32, %c0_i32_0 : i32, i32
  }
  func.func @transform_2(%arg0: i32) -> (i32, i32) {
    %c0_i32 = arith.constant 0 : i32
    %c0_i32_0 = arith.constant 0 : i32
    %c0_i32_1 = arith.constant 0 : i32
    return %c0_i32, %c0_i32_0 : i32, i32
  }
  func.func @transform_3(%arg0: i32) -> (i32, i32) {
    %c0_i32 = arith.constant 0 : i32
    %c0_i32_0 = arith.constant 0 : i32
    %c0_i32_1 = arith.constant 0 : i32
    return %c0_i32, %c0_i32_0 : i32, i32
  }
  func.func @transform_4(%arg0: i32) -> (i32, i32) {
    %c0_i32 = arith.constant 0 : i32
    %c0_i32_0 = arith.constant 0 : i32
    %c0_i32_1 = arith.constant 0 : i32
    return %c0_i32, %c0_i32_0 : i32, i32
  }
}

</mosaic_0001>

<llo_original>
// kernel: tpu_custom_call.1
$region0: #{tpu_custom_call.1}
  #allocation0 [shape = 'u32[]', space=smem, size = 0x4, offset = 0x4, fixed_abs, tag = 'smem constant byte address 0x4 - core index']
  #allocation1 [shape = 'u32[144,128]{1,0:T(1,128)}', space=vmem, size = 0x12000, scoped, tag = 'internal scratch']
  %s0 = inlined_call_operand.hbm [shape: f32[8,64], index: 0, kind: input, shape index: {}]
  %s1 = inlined_call_operand.hbm [shape: f32[64,1280], index: 1, kind: input, shape index: {}]
  %s2 = inlined_call_operand.vmem [shape: f32[1,640], index: 2, kind: input, shape index: {}]
  %s3 = inlined_call_operand.hbm [shape: f32[256,1024], index: 3, kind: input, shape index: {}]
  %s4 = inlined_call_operand.hbm [shape: f32[1,4], index: 4, kind: output, shape index: {}]
  %s5 = sld [smem:[#allocation0]]
  $region38: #{tpu_custom_call.1} parent=0
    _
  %s7 = ssub.s32 1, %s5
  %s8 = scalar_select 0, %s7, %s5
  $region1: #{tpu_custom_call.1} parent=0
    #allocation2 [shape = 'u8[4096]{0}', space=vmem, size = 0x1000, scoped, tag = 'input window, operand 0, single buffered']
    #allocation3 [shape = 's32[1]{0}', space=sflag, size = 0x4, scoped, tag = 'scoped memory for tpu_custom_call.1']
    #allocation4 [shape = 's32[1]{0}', space=sflag, size = 0x4, scoped, tag = 'scoped memory for tpu_custom_call.1']
    #allocation5 [shape = 'u8[327680]{0}', space=vmem, size = 0x50000, scoped, tag = 'input window, operand 1, single buffered']
    #allocation6 [shape = 's32[1]{0}', space=sflag, size = 0x4, scoped, tag = 'scoped memory for tpu_custom_call.1']
    #allocation7 [shape = 'u8[1048576]{0}', space=vmem, size = 0x100000, scoped, tag = 'input window, operand 3, single buffered']
    #allocation8 [shape = 'u8[512]{0}', space=vmem, size = 0x400, scoped, tag = 'output window, operand 0, single buffered']
    %9 = vsyncpa [#allocation3], 0
    %10 = vsyncpa [#allocation6], 0
    %11 = vsyncpa [#allocation4], 0
    // Predicated region
    $region2: #{tpu_custom_call.1} parent=1 // pred_check
      _
    $region3: #{tpu_custom_call.1} parent=1 // pred_check_branch
      %13 = sbr.rel (0) target = $region5
    $region4: #{tpu_custom_call.1} parent=1 // pred_region
      %s15 = ssub.s32 128, 128
      %16 = vsyncadd [#allocation3], %s15
      %s18 = sshll.u32 [#allocation2], 4
      %s19 = int_to_ptr.vmem [resolvable:$true] %s18
      %21 = dma.hbm_to_vmem [thread:$0]  %s0, 128, %s19, [#allocation3]
    $region5: #{tpu_custom_call.1} parent=1 // pred_fallthru
      _
    // Predicated region
    $region6: #{tpu_custom_call.1} parent=1 // pred_check
      _
    $region7: #{tpu_custom_call.1} parent=1 // pred_check_branch
      %23 = sbr.rel (0) target = $region9
    $region8: #{tpu_custom_call.1} parent=1 // pred_region
      %s25 = ssub.s32 10240, 10240
      %26 = vsyncadd [#allocation6], %s25
      %s27 = sshll.u32 [#allocation5], 4
      %s28 = int_to_ptr.vmem [resolvable:$true] %s27
      %33 = dma.hbm_to_vmem [thread:$0]  %s1, 10240, %s28, [#allocation6], 1280, 1280, 80
    $region9: #{tpu_custom_call.1} parent=1 // pred_fallthru
      _
    // Predicated region
    $region10: #{tpu_custom_call.1} parent=1 // pred_check
      _
    $region11: #{tpu_custom_call.1} parent=1 // pred_check_branch
      %35 = sbr.rel (0) target = $region13
    $region12: #{tpu_custom_call.1} parent=1 // pred_region
      _
    $region13: #{tpu_custom_call.1} parent=1 // pred_fallthru
      _
    // Predicated region
    $region14: #{tpu_custom_call.1} parent=1 // pred_check
      _
    $region15: #{tpu_custom_call.1} parent=1 // pred_check_branch
      %37 = sbr.rel (0) target = $region17
    $region16: #{tpu_custom_call.1} parent=1 // pred_region
      %s39 = ssub.s32 32768, 32768
      %40 = vsyncadd [#allocation6], %s39
      %s41 = sshll.u32 [#allocation7], 4
      %s42 = int_to_ptr.vmem [resolvable:$true] %s41
      %47 = dma.hbm_to_vmem [thread:$0]  %s3, 32768, %s42, [#allocation6], 1024, 1024, 64
    $region17: #{tpu_custom_call.1} parent=1 // pred_fallthru
      _
    // Predicated region
    $region18: #{tpu_custom_call.1} parent=1 // pred_check
      _
    $region19: #{tpu_custom_call.1} parent=1 // pred_check_branch
      %49 = sbr.rel (0) target = $region21
    $region20: #{tpu_custom_call.1} parent=1 // pred_region
      %50 = dma.done [#allocation3], 128
    $region21: #{tpu_custom_call.1} parent=1 // pred_fallthru
      _
    // Predicated region
    $region22: #{tpu_custom_call.1} parent=1 // pred_check
      _
    $region23: #{tpu_custom_call.1} parent=1 // pred_check_branch
      %52 = sbr.rel (0) target = $region25
    $region24: #{tpu_custom_call.1} parent=1 // pred_region
      %53 = dma.done [#allocation6], 10240
    $region25: #{tpu_custom_call.1} parent=1 // pred_fallthru
      _
    // Predicated region
    $region26: #{tpu_custom_call.1} parent=1 // pred_check
      _
    $region27: #{tpu_custom_call.1} parent=1 // pred_check_branch
      %55 = sbr.rel (0) target = $region29
    $region28: #{tpu_custom_call.1} parent=1 // pred_region
      %56 = dma.done [#allocation6], 32768
    $region29: #{tpu_custom_call.1} parent=1 // pred_fallthru
      _
    %v57 = vld [vmem:[#allocation2] sm:$0xff]
    %vm58 = vcmask 523264
    %v59 = vsel %vm58, %v57, 0.0
    %60 = vadd.xlane.f32.xlu0 %v59
    %v61 = vpop.xlane.xlu0 %60
    %v62 = vrcp.pop 64.0
    %v63 = vmul.f32 %v61, %v62
    %v64 = vsub.f32 %v57, %v63
    %v65 = vmul.f32 %v64, %v64
    %vm66 = vcmask 519168
    %v67 = vsel %vm66, %v65, 0.0
    %68 = vadd.xlane.f32.xlu0 %v67
    %v69 = vpop.xlane.xlu0 %68
    %vm70 = vcmask 523268
    %v71 = vsel %vm70, %v65, 0.0
    %72 = vadd.xlane.f32.xlu0 %v71
    %v73 = vpop.xlane.xlu0 %72
    %v75 = vrot.slane %v73, 4
    %v77 = vmul.f32 %v69, %v75
    %v78 = vrsqrt.pop %v77
    %v79 = vmul.f32 %v77, %v78
    %vm80 = vcmp.eq.f32.partialorder %v77, inf
    %v81 = vsel %vm80, %v77, %v79
    %vm82 = vcmp.eq.f32.partialorder %v77, 0.0
    %v83 = vand.u32 %v77, 2147483648
    %v84 = vsel %vm82, %v83, %v81
    %v85 = vmul.f32 %v84, 0.015873017
    %v86 = vld [vmem:[#allocation5] sm:$0xff]
    %v87 = vld [vmem:[#allocation5 + $0x8] sm:$0xff]
    %v88 = vld [vmem:[#allocation5 + $0x10] sm:$0xff]
    %v89 = vld [vmem:[#allocation5 + $0x18] sm:$0xff]
    %v90 = vld [vmem:[#allocation5 + $0x20] sm:$0xff]
    %v91 = vld [vmem:[#allocation5 + $0x28] sm:$0xff]
    %v92 = vld [vmem:[#allocation5 + $0x30] sm:$0xff]
    %v93 = vld [vmem:[#allocation5 + $0x38] sm:$0xff]
    %v94 = vld [vmem:[#allocation5 + $0x40] sm:$0xff]
    %v95 = vld [vmem:[#allocation5 + $0x48] sm:$0xff]
    %v96 = vld [vmem:[#allocation5 + $0x50] sm:$0xff]
    %v97 = vld [vmem:[#allocation5 + $0x58] sm:$0xff]
    %v98 = vld [vmem:[#allocation5 + $0x60] sm:$0xff]
    %v99 = vld [vmem:[#allocation5 + $0x68] sm:$0xff]
    %v100 = vld [vmem:[#allocation5 + $0x70] sm:$0xff]
    %v101 = vld [vmem:[#allocation5 + $0x78] sm:$0xff]
    %v102 = vld [vmem:[#allocation5 + $0x80] sm:$0xff]
    %v103 = vld [vmem:[#allocation5 + $0x88] sm:$0xff]
    %v104 = vld [vmem:[#allocation5 + $0x90] sm:$0xff]
    %v105 = vld [vmem:[#allocation5 + $0x98] sm:$0xff]
    %v106 = vld [vmem:[#allocation5 + $0xa0] sm:$0xff]
    %v107 = vld [vmem:[#allocation5 + $0xa8] sm:$0xff]
    %v108 = vld [vmem:[#allocation5 + $0xb0] sm:$0xff]
    %v109 = vld [vmem:[#allocation5 + $0xb8] sm:$0xff]
    %v110 = vld [vmem:[#allocation5 + $0xc0] sm:$0xff]
    %v111 = vld [vmem:[#allocation5 + $0xc8] sm:$0xff]
    %v112 = vld [vmem:[#allocation5 + $0xd0] sm:$0xff]
    %v113 = vld [vmem:[#allocation5 + $0xd8] sm:$0xff]
    %v114 = vld [vmem:[#allocation5 + $0xe0] sm:$0xff]
    %v115 = vld [vmem:[#allocation5 + $0xe8] sm:$0xff]
    %v116 = vld [vmem:[#allocation5 + $0xf0] sm:$0xff]
    %v117 = vld [vmem:[#allocation5 + $0xf8] sm:$0xff]
    %v118 = vld [vmem:[#allocation5 + $0x100] sm:$0xff]
    %v119 = vld [vmem:[#allocation5 + $0x108] sm:$0xff]
    %v120 = vld [vmem:[#allocation5 + $0x110] sm:$0xff]
    %v121 = vld [vmem:[#allocation5 + $0x118] sm:$0xff]
    %v122 = vld [vmem:[#allocation5 + $0x120] sm:$0xff]
    %v123 = vld [vmem:[#allocation5 + $0x128] sm:$0xff]
    %v124 = vld [vmem:[#allocation5 + $0x130] sm:$0xff]
    %v125 = vld [vmem:[#allocation5 + $0x138] sm:$0xff]
    %v126 = vld [vmem:[#allocation5 + $0x140] sm:$0xff]
    %v127 = vld [vmem:[#allocation5 + $0x148] sm:$0xff]
    %v128 = vld [vmem:[#allocation5 + $0x150] sm:$0xff]
    %v129 = vld [vmem:[#allocation5 + $0x158] sm:$0xff]
    %v130 = vld [vmem:[#allocation5 + $0x160] sm:$0xff]
    %v131 = vld [vmem:[#allocation5 + $0x168] sm:$0xff]
    %v132 = vld [vmem:[#allocation5 + $0x170] sm:$0xff]
    %v133 = vld [vmem:[#allocation5 + $0x178] sm:$0xff]
    %v134 = vld [vmem:[#allocation5 + $0x180] sm:$0xff]
    %v135 = vld [vmem:[#allocation5 + $0x188] sm:$0xff]
    %v136 = vld [vmem:[#allocation5 + $0x190] sm:$0xff]
    %v137 = vld [vmem:[#allocation5 + $0x198] sm:$0xff]
    %v138 = vld [vmem:[#allocation5 + $0x1a0] sm:$0xff]
    %v139 = vld [vmem:[#allocation5 + $0x1a8] sm:$0xff]
    %v140 = vld [vmem:[#allocation5 + $0x1b0] sm:$0xff]
    %v141 = vld [vmem:[#allocation5 + $0x1b8] sm:$0xff]
    %v142 = vld [vmem:[#allocation5 + $0x1c0] sm:$0xff]
    %v143 = vld [vmem:[#allocation5 + $0x1c8] sm:$0xff]
    %v144 = vld [vmem:[#allocation5 + $0x1d0] sm:$0xff]
    %v145 = vld [vmem:[#allocation5 + $0x1d8] sm:$0xff]
    %v146 = vld [vmem:[#allocation5 + $0x1e0] sm:$0xff]
    %v147 = vld [vmem:[#allocation5 + $0x1e8] sm:$0xff]
    %v148 = vld [vmem:[#allocation5 + $0x1f0] sm:$0xff]
    %v149 = vld [vmem:[#allocation5 + $0x1f8] sm:$0xff]
    %v150 = vld [vmem:[#allocation5 + $0x200] sm:$0xff]
    %v151 = vld [vmem:[#allocation5 + $0x208] sm:$0xff]
    %v152 = vld [vmem:[#allocation5 + $0x210] sm:$0xff]
    %v153 = vld [vmem:[#allocation5 + $0x218] sm:$0xff]
    %v154 = vld [vmem:[#allocation5 + $0x220] sm:$0xff]
    %v155 = vld [vmem:[#allocation5 + $0x228] sm:$0xff]
    %v156 = vld [vmem:[#allocation5 + $0x230] sm:$0xff]
    %v157 = vld [vmem:[#allocation5 + $0x238] sm:$0xff]
    %v158 = vld [vmem:[#allocation5 + $0x240] sm:$0xff]
    %v159 = vld [vmem:[#allocation5 + $0x248] sm:$0xff]
    %v160 = vld [vmem:[#allocation5 + $0x250] sm:$0xff]
    %v161 = vld [vmem:[#allocation5 + $0x258] sm:$0xff]
    %v162 = vld [vmem:[#allocation5 + $0x260] sm:$0xff]
    %v163 = vld [vmem:[#allocation5 + $0x268] sm:$0xff]
    %v164 = vld [vmem:[#allocation5 + $0x270] sm:$0xff]
    %v165 = vld [vmem:[#allocation5 + $0x278] sm:$0xff]
    %v167 = vsel %vm58, %v64, 0
    %169 = vmatprep.subr.mxu0 %v87
    %170 = vmatpush1.msra.mxu0 %v86
    %171 = vmatprep.subr.mxu0 %v97
    %172 = vmatpush1.msra.mxu0 %v96
    %173 = vmatprep.subr.mxu0 %v107
    %174 = vmatpush1.msra.mxu0 %v106
    %175 = vmatprep.subr.mxu0 %v117
    %176 = vmatpush1.msra.mxu0 %v116
    %177 = vmatprep.subr.mxu0 %v127
    %178 = vmatpush1.msra.mxu0 %v126
    %179 = vmatprep.subr.mxu0 %v137
    %180 = vmatpush1.msra.mxu0 %v136
    %181 = vmatprep.subr.mxu0 %v147
    %182 = vmatpush1.msra.mxu0 %v146
    %183 = vmatprep.subr.mxu0 %v157
    %184 = vmatpush1.msra.mxu0 %v156
    %185 = vmatprep.subr.mxu0 0.0
    %186 = vmatpush1.msra.mxu0 0.0
    %187 = vmatprep.subr.mxu0 0.0
    %188 = vmatpush1.msra.mxu0 0.0
    %189 = vmatprep.subr.mxu0 0.0
    %190 = vmatpush1.msra.mxu0 0.0
    %191 = vmatprep.subr.mxu0 0.0
    %192 = vmatpush1.msra.mxu0 0.0
    %193 = vmatprep.subr.mxu0 0.0
    %194 = vmatpush1.msra.mxu0 0.0
    %195 = vmatprep.subr.mxu0 0.0
    %196 = vmatpush1.msra.mxu0 0.0
    %197 = vmatprep.subr.mxu0 0.0
    %198 = vmatpush1.msra.mxu0 0.0
    %199 = vmatprep.subr.mxu0 0.0
    %200 = vmatpush1.msra.mxu0 0.0
    %201 = vmatprep.subr.mxu0 0.0
    %202 = vmatpush1.msra.mxu0 0.0
    %203 = vmatprep.subr.mxu0 0.0
    %204 = vmatpush1.msra.mxu0 0.0
    %205 = vmatprep.subr.mxu0 0.0
    %206 = vmatpush1.msra.mxu0 0.0
    %207 = vmatprep.subr.mxu0 0.0
    %208 = vmatpush1.msra.mxu0 0.0
    %209 = vmatprep.subr.mxu0 0.0
    %210 = vmatpush1.msra.mxu0 0.0
    %211 = vmatprep.subr.mxu0 0.0
    %212 = vmatpush1.msra.mxu0 0.0
    %213 = vmatprep.subr.mxu0 0.0
    %214 = vmatpush1.msra.mxu0 0.0
    %215 = vmatprep.subr.mxu0 0.0
    %216 = vmatpush1.msra.mxu0 0.0
    %217 = vmatprep.subr.mxu0 0.0
    %218 = vmatpush1.msra.mxu0 0.0
    %219 = vmatprep.subr.mxu0 0.0
    %220 = vmatpush1.msra.mxu0 0.0
    %221 = vmatprep.subr.mxu0 0.0
    %222 = vmatpush1.msra.mxu0 0.0
    %223 = vmatprep.subr.mxu0 0.0
    %224 = vmatpush1.msra.mxu0 0.0
    %225 = vmatprep.subr.mxu0 0.0
    %226 = vmatpush1.msra.mxu0 0.0
    %227 = vmatprep.subr.mxu0 0.0
    %228 = vmatpush1.msra.mxu0 0.0
    %229 = vmatprep.subr.mxu0 0.0
    %230 = vmatpush1.msra.mxu0 0.0
    %231 = vmatprep.subr.mxu0 0.0
    %232 = vmatpush1.msra.mxu0 0.0
    %233 = vmatprep.mubr.f32.mxu0 0.0
    %234 = vmatmul.mubr.f32.gmra.mrb[0].mxu0 %v167
    %v235 = vpop.f32.mrb[0].mxu0
    %v236 = vadd.f32 0.0, %v235
    %v237 = vpop.f32.mrb[0].mxu0
    %v238 = vadd.f32 0.0, %v237
    %239 = vdwg.mxu0
    %240 = vmatprep.subr.mxu0 %v89
    %241 = vmatpush1.msra.mxu0 %v88
    %242 = vmatprep.subr.mxu0 %v99
    %243 = vmatpush1.msra.mxu0 %v98
    %244 = vmatprep.subr.mxu0 %v109
    %245 = vmatpush1.msra.mxu0 %v108
    %246 = vmatprep.subr.mxu0 %v119
    %247 = vmatpush1.msra.mxu0 %v118
    %248 = vmatprep.subr.mxu0 %v129
    %249 = vmatpush1.msra.mxu0 %v128
    %250 = vmatprep.subr.mxu0 %v139
    %251 = vmatpush1.msra.mxu0 %v138
    %252 = vmatprep.subr.mxu0 %v149
    %253 = vmatpush1.msra.mxu0 %v148
    %254 = vmatprep.subr.mxu0 %v159
    %255 = vmatpush1.msra.mxu0 %v158
    %256 = vmatprep.subr.mxu0 0.0
    %257 = vmatpush1.msra.mxu0 0.0
    %258 = vmatprep.subr.mxu0 0.0
    %259 = vmatpush1.msra.mxu0 0.0
    %260 = vmatprep.subr.mxu0 0.0
    %261 = vmatpush1.msra.mxu0 0.0
    %262 = vmatprep.subr.mxu0 0.0
    %263 = vmatpush1.msra.mxu0 0.0
    %264 = vmatprep.subr.mxu0 0.0
    %265 = vmatpush1.msra.mxu0 0.0
    %266 = vmatprep.subr.mxu0 0.0
    %267 = vmatpush1.msra.mxu0 0.0
    %268 = vmatprep.subr.mxu0 0.0
    %269 = vmatpush1.msra.mxu0 0.0
    %270 = vmatprep.subr.mxu0 0.0
    %271 = vmatpush1.msra.mxu0 0.0
    %272 = vmatprep.subr.mxu0 0.0
    %273 = vmatpush1.msra.mxu0 0.0
    %274 = vmatprep.subr.mxu0 0.0
    %275 = vmatpush1.msra.mxu0 0.0
    %276 = vmatprep.subr.mxu0 0.0
    %277 = vmatpush1.msra.mxu0 0.0
    %278 = vmatprep.subr.mxu0 0.0
    %279 = vmatpush1.msra.mxu0 0.0
    %280 = vmatprep.subr.mxu0 0.0
    %281 = vmatpush1.msra.mxu0 0.0
    %282 = vmatprep.subr.mxu0 0.0
    %283 = vmatpush1.msra.mxu0 0.0
    %284 = vmatprep.subr.mxu0 0.0
    %285 = vmatpush1.msra.mxu0 0.0
    %286 = vmatprep.subr.mxu0 0.0
    %287 = vmatpush1.msra.mxu0 0.0
    %288 = vmatprep.subr.mxu0 0.0
    %289 = vmatpush1.msra.mxu0 0.0
    %290 = vmatprep.subr.mxu0 0.0
    %291 = vmatpush1.msra.mxu0 0.0
    %292 = vmatprep.subr.mxu0 0.0
    %293 = vmatpush1.msra.mxu0 0.0
    %294 = vmatprep.subr.mxu0 0.0
    %295 = vmatpush1.msra.mxu0 0.0
    %296 = vmatprep.subr.mxu0 0.0
    %297 = vmatpush1.msra.mxu0 0.0
    %298 = vmatprep.subr.mxu0 0.0
    %299 = vmatpush1.msra.mxu0 0.0
    %300 = vmatprep.subr.mxu0 0.0
    %301 = vmatpush1.msra.mxu0 0.0
    %302 = vmatprep.subr.mxu0 0.0
    %303 = vmatpush1.msra.mxu0 0.0
    %304 = vmatprep.mubr.f32.mxu0 0.0
    %305 = vmatmul.mubr.f32.gmra.mrb[0].mxu0 %v167
    %v306 = vpop.f32.mrb[0].mxu0
    %v307 = vadd.f32 0.0, %v306
    %v308 = vpop.f32.mrb[0].mxu0
    %v309 = vadd.f32 0.0, %v308
    %310 = vdwg.mxu0
    %311 = vmatprep.subr.mxu0 %v91
    %312 = vmatpush1.msra.mxu0 %v90
    %313 = vmatprep.subr.mxu0 %v101
    %314 = vmatpush1.msra.mxu0 %v100
    %315 = vmatprep.subr.mxu0 %v111
    %316 = vmatpush1.msra.mxu0 %v110
    %317 = vmatprep.subr.mxu0 %v121
    %318 = vmatpush1.msra.mxu0 %v120
    %319 = vmatprep.subr.mxu0 %v131
    %320 = vmatpush1.msra.mxu0 %v130
    %321 = vmatprep.subr.mxu0 %v141
    %322 = vmatpush1.msra.mxu0 %v140
    %323 = vmatprep.subr.mxu0 %v151
    %324 = vmatpush1.msra.mxu0 %v150
    %325 = vmatprep.subr.mxu0 %v161
    %326 = vmatpush1.msra.mxu0 %v160
    %327 = vmatprep.subr.mxu0 0.0
    %328 = vmatpush1.msra.mxu0 0.0
    %329 = vmatprep.subr.mxu0 0.0
    %330 = vmatpush1.msra.mxu0 0.0
    %331 = vmatprep.subr.mxu0 0.0
    %332 = vmatpush1.msra.mxu0 0.0
    %333 = vmatprep.subr.mxu0 0.0
    %334 = vmatpush1.msra.mxu0 0.0
    %335 = vmatprep.subr.mxu0 0.0
    %336 = vmatpush1.msra.mxu0 0.0
    %337 = vmatprep.subr.mxu0 0.0
    %338 = vmatpush1.msra.mxu0 0.0
    %339 = vmatprep.subr.mxu0 0.0
    %340 = vmatpush1.msra.mxu0 0.0
    %341 = vmatprep.subr.mxu0 0.0
    %342 = vmatpush1.msra.mxu0 0.0
    %343 = vmatprep.subr.mxu0 0.0
    %344 = vmatpush1.msra.mxu0 0.0
    %345 = vmatprep.subr.mxu0 0.0
    %346 = vmatpush1.msra.mxu0 0.0
    %347 = vmatprep.subr.mxu0 0.0
    %348 = vmatpush1.msra.mxu0 0.0
    %349 = vmatprep.subr.mxu0 0.0
    %350 = vmatpush1.msra.mxu0 0.0
    %351 = vmatprep.subr.mxu0 0.0
    %352 = vmatpush1.msra.mxu0 0.0
    %353 = vmatprep.subr.mxu0 0.0
    %354 = vmatpush1.msra.mxu0 0.0
    %355 = vmatprep.subr.mxu0 0.0
    %356 = vmatpush1.msra.mxu0 0.0
    %357 = vmatprep.subr.mxu0 0.0
    %358 = vmatpush1.msra.mxu0 0.0
    %359 = vmatprep.subr.mxu0 0.0
    %360 = vmatpush1.msra.mxu0 0.0
    %361 = vmatprep.subr.mxu0 0.0
    %362 = vmatpush1.msra.mxu0 0.0
    %363 = vmatprep.subr.mxu0 0.0
    %364 = vmatpush1.msra.mxu0 0.0
    %365 = vmatprep.subr.mxu0 0.0
    %366 = vmatpush1.msra.mxu0 0.0
    %367 = vmatprep.subr.mxu0 0.0
    %368 = vmatpush1.msra.mxu0 0.0
    %369 = vmatprep.subr.mxu0 0.0
    %370 = vmatpush1.msra.mxu0 0.0
    %371 = vmatprep.subr.mxu0 0.0
    %372 = vmatpush1.msra.mxu0 0.0
    %373 = vmatprep.subr.mxu0 0.0
    %374 = vmatpush1.msra.mxu0 0.0
    %375 = vmatprep.mubr.f32.mxu0 0.0
    %376 = vmatmul.mubr.f32.gmra.mrb[0].mxu0 %v167
    %v377 = vpop.f32.mrb[0].mxu0
    %v378 = vadd.f32 0.0, %v377
    %v379 = vpop.f32.mrb[0].mxu0
    %v380 = vadd.f32 0.0, %v379
    %381 = vdwg.mxu0
    %382 = vmatprep.subr.mxu0 %v93
    %383 = vmatpush1.msra.mxu0 %v92
    %384 = vmatprep.subr.mxu0 %v103
    %385 = vmatpush1.msra.mxu0 %v102
    %386 = vmatprep.subr.mxu0 %v113
    %387 = vmatpush1.msra.mxu0 %v112
    %388 = vmatprep.subr.mxu0 %v123
    %389 = vmatpush1.msra.mxu0 %v122
    %390 = vmatprep.subr.mxu0 %v133
    %391 = vmatpush1.msra.mxu0 %v132
    %392 = vmatprep.subr.mxu0 %v143
    %393 = vmatpush1.msra.mxu0 %v142
    %394 = vmatprep.subr.mxu0 %v153
    %395 = vmatpush1.msra.mxu0 %v152
    %396 = vmatprep.subr.mxu0 %v163
    %397 = vmatpush1.msra.mxu0 %v162
    %398 = vmatprep.subr.mxu0 0.0
    %399 = vmatpush1.msra.mxu0 0.0
    %400 = vmatprep.subr.mxu0 0.0
    %401 = vmatpush1.msra.mxu0 0.0
    %402 = vmatprep.subr.mxu0 0.0
    %403 = vmatpush1.msra.mxu0 0.0
    %404 = vmatprep.subr.mxu0 0.0
    %405 = vmatpush1.msra.mxu0 0.0
    %406 = vmatprep.subr.mxu0 0.0
    %407 = vmatpush1.msra.mxu0 0.0
    %408 = vmatprep.subr.mxu0 0.0
    %409 = vmatpush1.msra.mxu0 0.0
    %410 = vmatprep.subr.mxu0 0.0
    %411 = vmatpush1.msra.mxu0 0.0
    %412 = vmatprep.subr.mxu0 0.0
    %413 = vmatpush1.msra.mxu0 0.0
    %414 = vmatprep.subr.mxu0 0.0
    %415 = vmatpush1.msra.mxu0 0.0
    %416 = vmatprep.subr.mxu0 0.0
    %417 = vmatpush1.msra.mxu0 0.0
    %418 = vmatprep.subr.mxu0 0.0
    %419 = vmatpush1.msra.mxu0 0.0
    %420 = vmatprep.subr.mxu0 0.0
    %421 = vmatpush1.msra.mxu0 0.0
    %422 = vmatprep.subr.mxu0 0.0
    %423 = vmatpush1.msra.mxu0 0.0
    %424 = vmatprep.subr.mxu0 0.0
    %425 = vmatpush1.msra.mxu0 0.0
    %426 = vmatprep.subr.mxu0 0.0
    %427 = vmatpush1.msra.mxu0 0.0
    %428 = vmatprep.subr.mxu0 0.0
    %429 = vmatpush1.msra.mxu0 0.0
    %430 = vmatprep.subr.mxu0 0.0
    %431 = vmatpush1.msra.mxu0 0.0
    %432 = vmatprep.subr.mxu0 0.0
    %433 = vmatpush1.msra.mxu0 0.0
    %434 = vmatprep.subr.mxu0 0.0
    %435 = vmatpush1.msra.mxu0 0.0
    %436 = vmatprep.subr.mxu0 0.0
    %437 = vmatpush1.msra.mxu0 0.0
    %438 = vmatprep.subr.mxu0 0.0
    %439 = vmatpush1.msra.mxu0 0.0
    %440 = vmatprep.subr.mxu0 0.0
    %441 = vmatpush1.msra.mxu0 0.0
    %442 = vmatprep.subr.mxu0 0.0
    %443 = vmatpush1.msra.mxu0 0.0
    %444 = vmatprep.subr.mxu0 0.0
    %445 = vmatpush1.msra.mxu0 0.0
    %446 = vmatprep.mubr.f32.mxu0 0.0
    %447 = vmatmul.mubr.f32.gmra.mrb[0].mxu0 %v167
    %v448 = vpop.f32.mrb[0].mxu0
    %v449 = vadd.f32 0.0, %v448
    %v450 = vpop.f32.mrb[0].mxu0
    %v451 = vadd.f32 0.0, %v450
    %452 = vdwg.mxu0
    %453 = vmatprep.subr.mxu0 %v95
    %454 = vmatpush1.msra.mxu0 %v94
    %455 = vmatprep.subr.mxu0 %v105
    %456 = vmatpush1.msra.mxu0 %v104
    %457 = vmatprep.subr.mxu0 %v115
    %458 = vmatpush1.msra.mxu0 %v114
    %459 = vmatprep.subr.mxu0 %v125
    %460 = vmatpush1.msra.mxu0 %v124
    %461 = vmatprep.subr.mxu0 %v135
    %462 = vmatpush1.msra.mxu0 %v134
    %463 = vmatprep.subr.mxu0 %v145
    %464 = vmatpush1.msra.mxu0 %v144
    %465 = vmatprep.subr.mxu0 %v155
    %466 = vmatpush1.msra.mxu0 %v154
    %467 = vmatprep.subr.mxu0 %v165
    %468 = vmatpush1.msra.mxu0 %v164
    %469 = vmatprep.subr.mxu0 0.0
    %470 = vmatpush1.msra.mxu0 0.0
    %471 = vmatprep.subr.mxu0 0.0
    %472 = vmatpush1.msra.mxu0 0.0
    %473 = vmatprep.subr.mxu0 0.0
    %474 = vmatpush1.msra.mxu0 0.0
    %475 = vmatprep.subr.mxu0 0.0
    %476 = vmatpush1.msra.mxu0 0.0
    %477 = vmatprep.subr.mxu0 0.0
    %478 = vmatpush1.msra.mxu0 0.0
    %479 = vmatprep.subr.mxu0 0.0
    %480 = vmatpush1.msra.mxu0 0.0
    %481 = vmatprep.subr.mxu0 0.0
    %482 = vmatpush1.msra.mxu0 0.0
    %483 = vmatprep.subr.mxu0 0.0
    %484 = vmatpush1.msra.mxu0 0.0
    %485 = vmatprep.subr.mxu0 0.0
    %486 = vmatpush1.msra.mxu0 0.0
    %487 = vmatprep.subr.mxu0 0.0
    %488 = vmatpush1.msra.mxu0 0.0
    %489 = vmatprep.subr.mxu0 0.0
    %490 = vmatpush1.msra.mxu0 0.0
    %491 = vmatprep.subr.mxu0 0.0
    %492 = vmatpush1.msra.mxu0 0.0
    %493 = vmatprep.subr.mxu0 0.0
    %494 = vmatpush1.msra.mxu0 0.0
    %495 = vmatprep.subr.mxu0 0.0
    %496 = vmatpush1.msra.mxu0 0.0
    %497 = vmatprep.subr.mxu0 0.0
    %498 = vmatpush1.msra.mxu0 0.0
    %499 = vmatprep.subr.mxu0 0.0
    %500 = vmatpush1.msra.mxu0 0.0
    %501 = vmatprep.subr.mxu0 0.0
    %502 = vmatpush1.msra.mxu0 0.0
    %503 = vmatprep.subr.mxu0 0.0
    %504 = vmatpush1.msra.mxu0 0.0
    %505 = vmatprep.subr.mxu0 0.0
    %506 = vmatpush1.msra.mxu0 0.0
    %507 = vmatprep.subr.mxu0 0.0
    %508 = vmatpush1.msra.mxu0 0.0
    %509 = vmatprep.subr.mxu0 0.0
    %510 = vmatpush1.msra.mxu0 0.0
    %511 = vmatprep.subr.mxu0 0.0
    %512 = vmatpush1.msra.mxu0 0.0
    %513 = vmatprep.subr.mxu0 0.0
    %514 = vmatpush1.msra.mxu0 0.0
    %515 = vmatprep.subr.mxu0 0.0
    %516 = vmatpush1.msra.mxu0 0.0
    %517 = vmatprep.mubr.f32.mxu0 0.0
    %518 = vmatmul.mubr.f32.gmra.mrb[0].mxu0 %v167
    %v519 = vpop.f32.mrb[0].mxu0
    %v520 = vadd.f32 0.0, %v519
    %v521 = vpop.f32.mrb[0].mxu0
    %v522 = vadd.f32 0.0, %v521
    %523 = vdwg.mxu0
    %v529 = vrot.slane %v236, 4
    %v530 = vrot.slane %v238, 4
    %v531 = vrot.slane %v307, 4
    %v532 = vrot.slane %v309, 4
    %v533 = vrot.slane %v378, 4
    %v539 = vmul.f32 %v236, %v529
    %v540 = vmul.f32 %v238, %v530
    %v541 = vmul.f32 %v307, %v531
    %v542 = vmul.f32 %v309, %v532
    %v543 = vmul.f32 %v378, %v533
    %v549 = vrot.slane %v380, 4
    %v550 = vrot.slane %v449, 4
    %v551 = vrot.slane %v451, 4
    %v552 = vrot.slane %v520, 4
    %v553 = vrot.slane %v522, 4
    %v559 = vmul.f32 %v380, %v549
    %v560 = vmul.f32 %v449, %v550
    %v561 = vmul.f32 %v451, %v551
    %v562 = vmul.f32 %v520, %v552
    %v563 = vmul.f32 %v522, %v553
    %v564 = vadd.f32 %v539, %v559
    %v565 = vadd.f32 %v540, %v560
    %v566 = vadd.f32 %v541, %v561
    %v567 = vadd.f32 %v542, %v562
    %v568 = vadd.f32 %v543, %v563
    %v569 = vmul.f32 %v236, %v549
    %v570 = vmul.f32 %v238, %v550
    %v571 = vmul.f32 %v307, %v551
    %v572 = vmul.f32 %v309, %v552
    %v573 = vmul.f32 %v378, %v553
    %v574 = vmul.f32 %v380, %v529
    %v575 = vmul.f32 %v449, %v530
    %v576 = vmul.f32 %v451, %v531
    %v577 = vmul.f32 %v520, %v532
    %v578 = vmul.f32 %v522, %v533
    %v579 = vsub.f32 %v569, %v574
    %v580 = vsub.f32 %v570, %v575
    %v581 = vsub.f32 %v571, %v576
    %v582 = vsub.f32 %v572, %v577
    %v583 = vsub.f32 %v573, %v578
    %v584 = vld [vmem:[%s2] sm:$0x1f]
    %v585 = vmul.f32 %v564, %v564
    %v586 = vmul.f32 %v565, %v565
    %v587 = vmul.f32 %v566, %v566
    %v588 = vmul.f32 %v567, %v567
    %v589 = vmul.f32 %v568, %v568
    %v590 = vmul.f32 %v579, %v579
    %v591 = vmul.f32 %v580, %v580
    %v592 = vmul.f32 %v581, %v581
    %v593 = vmul.f32 %v582, %v582
    %v594 = vmul.f32 %v583, %v583
    %v595 = vadd.f32 %v585, %v590
    %v596 = vadd.f32 %v586, %v591
    %v597 = vadd.f32 %v587, %v592
    %v598 = vadd.f32 %v588, %v593
    %v599 = vadd.f32 %v589, %v594
    %v600 = vrsqrt.pop %v595
    %v601 = vmul.f32 %v595, %v600
    %vm602 = vcmp.eq.f32.partialorder %v595, inf
    %v603 = vsel %vm602, %v595, %v601
    %vm604 = vcmp.eq.f32.partialorder %v595, 0.0
    %v605 = vand.u32 %v595, 2147483648
    %v606 = vsel %vm604, %v605, %v603
    %v607 = vrsqrt.pop %v596
    %v608 = vmul.f32 %v596, %v607
    %vm609 = vcmp.eq.f32.partialorder %v596, inf
    %v610 = vsel %vm609, %v596, %v608
    %vm611 = vcmp.eq.f32.partialorder %v596, 0.0
    %v612 = vand.u32 %v596, 2147483648
    %v613 = vsel %vm611, %v612, %v610
    %v614 = vrsqrt.pop %v597
    %v615 = vmul.f32 %v597, %v614
    %vm616 = vcmp.eq.f32.partialorder %v597, inf
    %v617 = vsel %vm616, %v597, %v615
    %vm618 = vcmp.eq.f32.partialorder %v597, 0.0
    %v619 = vand.u32 %v597, 2147483648
    %v620 = vsel %vm618, %v619, %v617
    %v621 = vrsqrt.pop %v598
    %v622 = vmul.f32 %v598, %v621
    %vm623 = vcmp.eq.f32.partialorder %v598, inf
    %v624 = vsel %vm623, %v598, %v622
    %vm625 = vcmp.eq.f32.partialorder %v598, 0.0
    %v626 = vand.u32 %v598, 2147483648
    %v627 = vsel %vm625, %v626, %v624
    %v628 = vrsqrt.pop %v599
    %v629 = vmul.f32 %v599, %v628
    %vm630 = vcmp.eq.f32.partialorder %v599, inf
    %v631 = vsel %vm630, %v599, %v629
    %vm632 = vcmp.eq.f32.partialorder %v599, 0.0
    %v633 = vand.u32 %v599, 2147483648
    %v634 = vsel %vm632, %v633, %v631
    %v636 = vlaneseq
    %v637 = vshrl.u32 %v636, 7
    %v638 = vsub.s32 0, %v637
    %v639 = vrot.slane %v584, %v638
    %v640 = vlaneseq
    %v641 = vshrl.u32 %v640, 7
    %v642 = vsub.s32 1, %v641
    %v643 = vrot.slane %v584, %v642
    %v644 = vlaneseq
    %v645 = vshrl.u32 %v644, 7
    %v646 = vsub.s32 2, %v645
    %v647 = vrot.slane %v584, %v646
    %v648 = vlaneseq
    %v649 = vshrl.u32 %v648, 7
    %v650 = vsub.s32 3, %v649
    %v651 = vrot.slane %v584, %v650
    %v652 = vlaneseq
    %v653 = vshrl.u32 %v652, 7
    %v654 = vsub.s32 4, %v653
    %v655 = vrot.slane %v584, %v654
    %v661 = vmul.f32 %v606, %v639
    %v662 = vmul.f32 %v613, %v643
    %v663 = vmul.f32 %v620, %v647
    %v664 = vmul.f32 %v627, %v651
    %v665 = vmul.f32 %v634, %v655
    %vm666 = vcmask 1043456
    %v667 = vsel %vm666, %v661, 0.0
    %v668 = vsel %vm666, %v662, 0.0
    %v669 = vadd.f32 %v667, %v668
    %v670 = vsel %vm666, %v663, 0.0
    %v671 = vadd.f32 %v669, %v670
    %v672 = vsel %vm666, %v664, 0.0
    %v673 = vadd.f32 %v671, %v672
    %v674 = vsel %vm666, %v665, 0.0
    %v675 = vadd.f32 %v673, %v674
    %676 = vadd.xlane.f32.xlu0 %v675
    %v677 = vpop.xlane.xlu0 %676
    %v678 = vsel %vm666, %v606, 0.0
    %v679 = vsel %vm666, %v613, 0.0
    %v680 = vadd.f32 %v678, %v679
    %v681 = vsel %vm666, %v620, 0.0
    %v682 = vadd.f32 %v680, %v681
    %v683 = vsel %vm666, %v627, 0.0
    %v684 = vadd.f32 %v682, %v683
    %v685 = vsel %vm666, %v634, 0.0
    %v686 = vadd.f32 %v684, %v685
    %687 = vadd.xlane.f32.xlu0 %v686
    %v688 = vpop.xlane.xlu0 %687
    %vm689 = vcmp.gt.f32.partialorder %v688, 0.0
    %v690 = vsel %vm689, %v688, 1.0
    %v691 = vrcp.pop %v690
    %v692 = vmul.f32 %v677, %v691
    %v693 = vsel %vm689, %v692, 1.0
    %v694 = vld [vmem:[#allocation7] sm:$0xff]
    %v695 = vld [vmem:[#allocation7 + $0x8] sm:$0xff]
    %v696 = vld [vmem:[#allocation7 + $0x10] sm:$0xff]
    %v697 = vld [vmem:[#allocation7 + $0x18] sm:$0xff]
    %v698 = vld [vmem:[#allocation7 + $0x20] sm:$0xff]
    %v699 = vld [vmem:[#allocation7 + $0x28] sm:$0xff]
    %v700 = vld [vmem:[#allocation7 + $0x30] sm:$0xff]
    %v701 = vld [vmem:[#allocation7 + $0x38] sm:$0xff]
    %v702 = vld [vmem:[#allocation7 + $0x40] sm:$0xff]
    %v703 = vld [vmem:[#allocation7 + $0x48] sm:$0xff]
    %v704 = vld [vmem:[#allocation7 + $0x50] sm:$0xff]
    %v705 = vld [vmem:[#allocation7 + $0x58] sm:$0xff]
    %v706 = vld [vmem:[#allocation7 + $0x60] sm:$0xff]
    %v707 = vld [vmem:[#allocation7 + $0x68] sm:$0xff]
    %v708 = vld [vmem:[#allocation7 + $0x70] sm:$0xff]
    %v709 = vld [vmem:[#allocation7 + $0x78] sm:$0xff]
    %v710 = vld [vmem:[#allocation7 + $0x80] sm:$0xff]
    %v711 = vld [vmem:[#allocation7 + $0x88] sm:$0xff]
    %v712 = vld [vmem:[#allocation7 + $0x90] sm:$0xff]
    %v713 = vld [vmem:[#allocation7 + $0x98] sm:$0xff]
    %v714 = vld [vmem:[#allocation7 + $0xa0] sm:$0xff]
    %v715 = vld [vmem:[#allocation7 + $0xa8] sm:$0xff]
    %v716 = vld [vmem:[#allocation7 + $0xb0] sm:$0xff]
    %v717 = vld [vmem:[#allocation7 + $0xb8] sm:$0xff]
    %v718 = vld [vmem:[#allocation7 + $0xc0] sm:$0xff]
    %v719 = vld [vmem:[#allocation7 + $0xc8] sm:$0xff]
    %v720 = vld [vmem:[#allocation7 + $0xd0] sm:$0xff]
    %v721 = vld [vmem:[#allocation7 + $0xd8] sm:$0xff]
    %v722 = vld [vmem:[#allocation7 + $0xe0] sm:$0xff]
    %v723 = vld [vmem:[#allocation7 + $0xe8] sm:$0xff]
    %v724 = vld [vmem:[#allocation7 + $0xf0] sm:$0xff]
    %v725 = vld [vmem:[#allocation7 + $0xf8] sm:$0xff]
    %v726 = vld [vmem:[#allocation7 + $0x100] sm:$0xff]
    %v727 = vld [vmem:[#allocation7 + $0x108] sm:$0xff]
    %v728 = vld [vmem:[#allocation7 + $0x110] sm:$0xff]
    %v729 = vld [vmem:[#allocation7 + $0x118] sm:$0xff]
    %v730 = vld [vmem:[#allocation7 + $0x120] sm:$0xff]
    %v731 = vld [vmem:[#allocation7 + $0x128] sm:$0xff]
    %v732 = vld [vmem:[#allocation7 + $0x130] sm:$0xff]
    %v733 = vld [vmem:[#allocation7 + $0x138] sm:$0xff]
    %v734 = vld [vmem:[#allocation7 + $0x140] sm:$0xff]
    %v735 = vld [vmem:[#allocation7 + $0x148] sm:$0xff]
    %v736 = vld [vmem:[#allocation7 + $0x150] sm:$0xff]
    %v737 = vld [vmem:[#allocation7 + $0x158] sm:$0xff]
    %v738 = vld [vmem:[#allocation7 + $0x160] sm:$0xff]
    %v739 = vld [vmem:[#allocation7 + $0x168] sm:$0xff]
    %v740 = vld [vmem:[#allocation7 + $0x170] sm:$0xff]
    %v741 = vld [vmem:[#allocation7 + $0x178] sm:$0xff]
    %v742 = vld [vmem:[#allocation7 + $0x180] sm:$0xff]
    %v743 = vld [vmem:[#allocation7 + $0x188] sm:$0xff]
    %v744 = vld [vmem:[#allocation7 + $0x190] sm:$0xff]
    %v745 = vld [vmem:[#allocation7 + $0x198] sm:$0xff]
    %v746 = vld [vmem:[#allocation7 + $0x1a0] sm:$0xff]
    %v747 = vld [vmem:[#allocation7 + $0x1a8] sm:$0xff]
    %v748 = vld [vmem:[#allocation7 + $0x1b0] sm:$0xff]
    %v749 = vld [vmem:[#allocation7 + $0x1b8] sm:$0xff]
    %v750 = vld [vmem:[#allocation7 + $0x1c0] sm:$0xff]
    %v751 = vld [vmem:[#allocation7 + $0x1c8] sm:$0xff]
    %v752 = vld [vmem:[#allocation7 + $0x1d0] sm:$0xff]
    %v753 = vld [vmem:[#allocation7 + $0x1d8] sm:$0xff]
    %v754 = vld [vmem:[#allocation7 + $0x1e0] sm:$0xff]
    %v755 = vld [vmem:[#allocation7 + $0x1e8] sm:$0xff]
    %v756 = vld [vmem:[#allocation7 + $0x1f0] sm:$0xff]
    %v757 = vld [vmem:[#allocation7 + $0x1f8] sm:$0xff]
    %v758 = vld [vmem:[#allocation7 + $0x200] sm:$0xff]
    %v759 = vld [vmem:[#allocation7 + $0x208] sm:$0xff]
    %v760 = vld [vmem:[#allocation7 + $0x210] sm:$0xff]
    %v761 = vld [vmem:[#allocation7 + $0x218] sm:$0xff]
    %v762 = vld [vmem:[#allocation7 + $0x220] sm:$0xff]
    %v763 = vld [vmem:[#allocation7 + $0x228] sm:$0xff]
    %v764 = vld [vmem:[#allocation7 + $0x230] sm:$0xff]
    %v765 = vld [vmem:[#allocation7 + $0x238] sm:$0xff]
    %v766 = vld [vmem:[#allocation7 + $0x240] sm:$0xff]
    %v767 = vld [vmem:[#allocation7 + $0x248] sm:$0xff]
    %v768 = vld [vmem:[#allocation7 + $0x250] sm:$0xff]
    %v769 = vld [vmem:[#allocation7 + $0x258] sm:$0xff]
    %v770 = vld [vmem:[#allocation7 + $0x260] sm:$0xff]
    %v771 = vld [vmem:[#allocation7 + $0x268] sm:$0xff]
    %v772 = vld [vmem:[#allocation7 + $0x270] sm:$0xff]
    %v773 = vld [vmem:[#allocation7 + $0x278] sm:$0xff]
    %v774 = vld [vmem:[#allocation7 + $0x280] sm:$0xff]
    %v775 = vld [vmem:[#allocation7 + $0x288] sm:$0xff]
    %v776 = vld [vmem:[#allocation7 + $0x290] sm:$0xff]
    %v777 = vld [vmem:[#allocation7 + $0x298] sm:$0xff]
    %v778 = vld [vmem:[#allocation7 + $0x2a0] sm:$0xff]
    %v779 = vld [vmem:[#allocation7 + $0x2a8] sm:$0xff]
    %v780 = vld [vmem:[#allocation7 + $0x2b0] sm:$0xff]
    %v781 = vld [vmem:[#allocation7 + $0x2b8] sm:$0xff]
    %v782 = vld [vmem:[#allocation7 + $0x2c0] sm:$0xff]
    %v783 = vld [vmem:[#allocation7 + $0x2c8] sm:$0xff]
    %v784 = vld [vmem:[#allocation7 + $0x2d0] sm:$0xff]
    %v785 = vld [vmem:[#allocation7 + $0x2d8] sm:$0xff]
    %v786 = vld [vmem:[#allocation7 + $0x2e0] sm:$0xff]
    %v787 = vld [vmem:[#allocation7 + $0x2e8] sm:$0xff]
    %v788 = vld [vmem:[#allocation7 + $0x2f0] sm:$0xff]
    %v789 = vld [vmem:[#allocation7 + $0x2f8] sm:$0xff]
    %v790 = vld [vmem:[#allocation7 + $0x300] sm:$0xff]
    %v791 = vld [vmem:[#allocation7 + $0x308] sm:$0xff]
    %v792 = vld [vmem:[#allocation7 + $0x310] sm:$0xff]
    %v793 = vld [vmem:[#allocation7 + $0x318] sm:$0xff]
    %v794 = vld [vmem:[#allocation7 + $0x320] sm:$0xff]
    %v795 = vld [vmem:[#allocation7 + $0x328] sm:$0xff]
    %v796 = vld [vmem:[#allocation7 + $0x330] sm:$0xff]
    %v797 = vld [vmem:[#allocation7 + $0x338] sm:$0xff]
    %v798 = vld [vmem:[#allocation7 + $0x340] sm:$0xff]
    %v799 = vld [vmem:[#allocation7 + $0x348] sm:$0xff]
    %v800 = vld [vmem:[#allocation7 + $0x350] sm:$0xff]
    %v801 = vld [vmem:[#allocation7 + $0x358] sm:$0xff]
    %v802 = vld [vmem:[#allocation7 + $0x360] sm:$0xff]
    %v803 = vld [vmem:[#allocation7 + $0x368] sm:$0xff]
    %v804 = vld [vmem:[#allocation7 + $0x370] sm:$0xff]
    %v805 = vld [vmem:[#allocation7 + $0x378] sm:$0xff]
    %v806 = vld [vmem:[#allocation7 + $0x380] sm:$0xff]
    %v807 = vld [vmem:[#allocation7 + $0x388] sm:$0xff]
    %v808 = vld [vmem:[#allocation7 + $0x390] sm:$0xff]
    %v809 = vld [vmem:[#allocation7 + $0x398] sm:$0xff]
    %v810 = vld [vmem:[#allocation7 + $0x3a0] sm:$0xff]
    %v811 = vld [vmem:[#allocation7 + $0x3a8] sm:$0xff]
    %v812 = vld [vmem:[#allocation7 + $0x3b0] sm:$0xff]
    %v813 = vld [vmem:[#allocation7 + $0x3b8] sm:$0xff]
    %v814 = vld [vmem:[#allocation7 + $0x3c0] sm:$0xff]
    %v815 = vld [vmem:[#allocation7 + $0x3c8] sm:$0xff]
    %v816 = vld [vmem:[#allocation7 + $0x3d0] sm:$0xff]
    %v817 = vld [vmem:[#allocation7 + $0x3d8] sm:$0xff]
    %v818 = vld [vmem:[#allocation7 + $0x3e0] sm:$0xff]
    %v819 = vld [vmem:[#allocation7 + $0x3e8] sm:$0xff]
    %v820 = vld [vmem:[#allocation7 + $0x3f0] sm:$0xff]
    %v821 = vld [vmem:[#allocation7 + $0x3f8] sm:$0xff]
    %v822 = vld [vmem:[#allocation7 + $0x400] sm:$0xff]
    %v823 = vld [vmem:[#allocation7 + $0x408] sm:$0xff]
    %v824 = vld [vmem:[#allocation7 + $0x410] sm:$0xff]
    %v825 = vld [vmem:[#allocation7 + $0x418] sm:$0xff]
    %v826 = vld [vmem:[#allocation7 + $0x420] sm:$0xff]
    %v827 = vld [vmem:[#allocation7 + $0x428] sm:$0xff]
    %v828 = vld [vmem:[#allocation7 + $0x430] sm:$0xff]
    %v829 = vld [vmem:[#allocation7 + $0x438] sm:$0xff]
    %v830 = vld [vmem:[#allocation7 + $0x440] sm:$0xff]
    %v831 = vld [vmem:[#allocation7 + $0x448] sm:$0xff]
    %v832 = vld [vmem:[#allocation7 + $0x450] sm:$0xff]
    %v833 = vld [vmem:[#allocation7 + $0x458] sm:$0xff]
    %v834 = vld [vmem:[#allocation7 + $0x460] sm:$0xff]
    %v835 = vld [vmem:[#allocation7 + $0x468] sm:$0xff]
    %v836 = vld [vmem:[#allocation7 + $0x470] sm:$0xff]
    %v837 = vld [vmem:[#allocation7 + $0x478] sm:$0xff]
    %v838 = vld [vmem:[#allocation7 + $0x480] sm:$0xff]
    %v839 = vld [vmem:[#allocation7 + $0x488] sm:$0xff]
    %v840 = vld [vmem:[#allocation7 + $0x490] sm:$0xff]
    %v841 = vld [vmem:[#allocation7 + $0x498] sm:$0xff]
    %v842 = vld [vmem:[#allocation7 + $0x4a0] sm:$0xff]
    %v843 = vld [vmem:[#allocation7 + $0x4a8] sm:$0xff]
    %v844 = vld [vmem:[#allocation7 + $0x4b0] sm:$0xff]
    %v845 = vld [vmem:[#allocation7 + $0x4b8] sm:$0xff]
    %v846 = vld [vmem:[#allocation7 + $0x4c0] sm:$0xff]
    %v847 = vld [vmem:[#allocation7 + $0x4c8] sm:$0xff]
    %v848 = vld [vmem:[#allocation7 + $0x4d0] sm:$0xff]
    %v849 = vld [vmem:[#allocation7 + $0x4d8] sm:$0xff]
    %v850 = vld [vmem:[#allocation7 + $0x4e0] sm:$0xff]
    %v851 = vld [vmem:[#allocation7 + $0x4e8] sm:$0xff]
    %v852 = vld [vmem:[#allocation7 + $0x4f0] sm:$0xff]
    %v853 = vld [vmem:[#allocation7 + $0x4f8] sm:$0xff]
    %v854 = vld [vmem:[#allocation7 + $0x500] sm:$0xff]
    %v855 = vld [vmem:[#allocation7 + $0x508] sm:$0xff]
    %v856 = vld [vmem:[#allocation7 + $0x510] sm:$0xff]
    %v857 = vld [vmem:[#allocation7 + $0x518] sm:$0xff]
    %v858 = vld [vmem:[#allocation7 + $0x520] sm:$0xff]
    %v859 = vld [vmem:[#allocation7 + $0x528] sm:$0xff]
    %v860 = vld [vmem:[#allocation7 + $0x530] sm:$0xff]
    %v861 = vld [vmem:[#allocation7 + $0x538] sm:$0xff]
    %v862 = vld [vmem:[#allocation7 + $0x540] sm:$0xff]
    %v863 = vld [vmem:[#allocation7 + $0x548] sm:$0xff]
    %v864 = vld [vmem:[#allocation7 + $0x550] sm:$0xff]
    %v865 = vld [vmem:[#allocation7 + $0x558] sm:$0xff]
    %v866 = vld [vmem:[#allocation7 + $0x560] sm:$0xff]
    %v867 = vld [vmem:[#allocation7 + $0x568] sm:$0xff]
    %v868 = vld [vmem:[#allocation7 + $0x570] sm:$0xff]
    %v869 = vld [vmem:[#allocation7 + $0x578] sm:$0xff]
    %v870 = vld [vmem:[#allocation7 + $0x580] sm:$0xff]
    %v871 = vld [vmem:[#allocation7 + $0x588] sm:$0xff]
    %v872 = vld [vmem:[#allocation7 + $0x590] sm:$0xff]
    %v873 = vld [vmem:[#allocation7 + $0x598] sm:$0xff]
    %v874 = vld [vmem:[#allocation7 + $0x5a0] sm:$0xff]
    %v875 = vld [vmem:[#allocation7 + $0x5a8] sm:$0xff]
    %v876 = vld [vmem:[#allocation7 + $0x5b0] sm:$0xff]
    %v877 = vld [vmem:[#allocation7 + $0x5b8] sm:$0xff]
    %v878 = vld [vmem:[#allocation7 + $0x5c0] sm:$0xff]
    %v879 = vld [vmem:[#allocation7 + $0x5c8] sm:$0xff]
    %v880 = vld [vmem:[#allocation7 + $0x5d0] sm:$0xff]
    %v881 = vld [vmem:[#allocation7 + $0x5d8] sm:$0xff]
    %v882 = vld [vmem:[#allocation7 + $0x5e0] sm:$0xff]
    %v883 = vld [vmem:[#allocation7 + $0x5e8] sm:$0xff]
    %v884 = vld [vmem:[#allocation7 + $0x5f0] sm:$0xff]
    %v885 = vld [vmem:[#allocation7 + $0x5f8] sm:$0xff]
    %v886 = vld [vmem:[#allocation7 + $0x600] sm:$0xff]
    %v887 = vld [vmem:[#allocation7 + $0x608] sm:$0xff]
    %v888 = vld [vmem:[#allocation7 + $0x610] sm:$0xff]
    %v889 = vld [vmem:[#allocation7 + $0x618] sm:$0xff]
    %v890 = vld [vmem:[#allocation7 + $0x620] sm:$0xff]
    %v891 = vld [vmem:[#allocation7 + $0x628] sm:$0xff]
    %v892 = vld [vmem:[#allocation7 + $0x630] sm:$0xff]
    %v893 = vld [vmem:[#allocation7 + $0x638] sm:$0xff]
    %v894 = vld [vmem:[#allocation7 + $0x640] sm:$0xff]
    %v895 = vld [vmem:[#allocation7 + $0x648] sm:$0xff]
    %v896 = vld [vmem:[#allocation7 + $0x650] sm:$0xff]
    %v897 = vld [vmem:[#allocation7 + $0x658] sm:$0xff]
    %v898 = vld [vmem:[#allocation7 + $0x660] sm:$0xff]
    %v899 = vld [vmem:[#allocation7 + $0x668] sm:$0xff]
    %v900 = vld [vmem:[#allocation7 + $0x670] sm:$0xff]
    %v901 = vld [vmem:[#allocation7 + $0x678] sm:$0xff]
    %v902 = vld [vmem:[#allocation7 + $0x680] sm:$0xff]
    %v903 = vld [vmem:[#allocation7 + $0x688] sm:$0xff]
    %v904 = vld [vmem:[#allocation7 + $0x690] sm:$0xff]
    %v905 = vld [vmem:[#allocation7 + $0x698] sm:$0xff]
    %v906 = vld [vmem:[#allocation7 + $0x6a0] sm:$0xff]
    %v907 = vld [vmem:[#allocation7 + $0x6a8] sm:$0xff]
    %v908 = vld [vmem:[#allocation7 + $0x6b0] sm:$0xff]
    %v909 = vld [vmem:[#allocation7 + $0x6b8] sm:$0xff]
    %v910 = vld [vmem:[#allocation7 + $0x6c0] sm:$0xff]
    %v911 = vld [vmem:[#allocation7 + $0x6c8] sm:$0xff]
    %v912 = vld [vmem:[#allocation7 + $0x6d0] sm:$0xff]
    %v913 = vld [vmem:[#allocation7 + $0x6d8] sm:$0xff]
    %v914 = vld [vmem:[#allocation7 + $0x6e0] sm:$0xff]
    %v915 = vld [vmem:[#allocation7 + $0x6e8] sm:$0xff]
    %v916 = vld [vmem:[#allocation7 + $0x6f0] sm:$0xff]
    %v917 = vld [vmem:[#allocation7 + $0x6f8] sm:$0xff]
    %v918 = vld [vmem:[#allocation7 + $0x700] sm:$0xff]
    %v919 = vld [vmem:[#allocation7 + $0x708] sm:$0xff]
    %v920 = vld [vmem:[#allocation7 + $0x710] sm:$0xff]
    %v921 = vld [vmem:[#allocation7 + $0x718] sm:$0xff]
    %v922 = vld [vmem:[#allocation7 + $0x720] sm:$0xff]
    %v923 = vld [vmem:[#allocation7 + $0x728] sm:$0xff]
    %v924 = vld [vmem:[#allocation7 + $0x730] sm:$0xff]
    %v925 = vld [vmem:[#allocation7 + $0x738] sm:$0xff]
    %v926 = vld [vmem:[#allocation7 + $0x740] sm:$0xff]
    %v927 = vld [vmem:[#allocation7 + $0x748] sm:$0xff]
    %v928 = vld [vmem:[#allocation7 + $0x750] sm:$0xff]
    %v929 = vld [vmem:[#allocation7 + $0x758] sm:$0xff]
    %v930 = vld [vmem:[#allocation7 + $0x760] sm:$0xff]
    %v931 = vld [vmem:[#allocation7 + $0x768] sm:$0xff]
    %v932 = vld [vmem:[#allocation7 + $0x770] sm:$0xff]
    %v933 = vld [vmem:[#allocation7 + $0x778] sm:$0xff]
    %v934 = vld [vmem:[#allocation7 + $0x780] sm:$0xff]
    %v935 = vld [vmem:[#allocation7 + $0x788] sm:$0xff]
    %v936 = vld [vmem:[#allocation7 + $0x790] sm:$0xff]
    %v937 = vld [vmem:[#allocation7 + $0x798] sm:$0xff]
    %v938 = vld [vmem:[#allocation7 + $0x7a0] sm:$0xff]
    %v939 = vld [vmem:[#allocation7 + $0x7a8] sm:$0xff]
    %v940 = vld [vmem:[#allocation7 + $0x7b0] sm:$0xff]
    %v941 = vld [vmem:[#allocation7 + $0x7b8] sm:$0xff]
    %v942 = vld [vmem:[#allocation7 + $0x7c0] sm:$0xff]
    %v943 = vld [vmem:[#allocation7 + $0x7c8] sm:$0xff]
    %v944 = vld [vmem:[#allocation7 + $0x7d0] sm:$0xff]
    %v945 = vld [vmem:[#allocation7 + $0x7d8] sm:$0xff]
    %v946 = vld [vmem:[#allocation7 + $0x7e0] sm:$0xff]
    %v947 = vld [vmem:[#allocation7 + $0x7e8] sm:$0xff]
    %v948 = vld [vmem:[#allocation7 + $0x7f0] sm:$0xff]
    %v949 = vld [vmem:[#allocation7 + $0x7f8] sm:$0xff]
    %950 = vmatprep.subr.mxu0 %v695
    %951 = vmatpush1.msra.mxu0 %v694
    %952 = vmatprep.subr.mxu0 %v703
    %953 = vmatpush1.msra.mxu0 %v702
    %954 = vmatprep.subr.mxu0 %v711
    %955 = vmatpush1.msra.mxu0 %v710
    %956 = vmatprep.subr.mxu0 %v719
    %957 = vmatpush1.msra.mxu0 %v718
    %958 = vmatprep.subr.mxu0 %v727
    %959 = vmatpush1.msra.mxu0 %v726
    %960 = vmatprep.subr.mxu0 %v735
    %961 = vmatpush1.msra.mxu0 %v734
    %962 = vmatprep.subr.mxu0 %v743
    %963 = vmatpush1.msra.mxu0 %v742
    %964 = vmatprep.subr.mxu0 %v751
    %965 = vmatpush1.msra.mxu0 %v750
    %966 = vmatprep.subr.mxu0 %v759
    %967 = vmatpush1.msra.mxu0 %v758
    %968 = vmatprep.subr.mxu0 %v767
    %969 = vmatpush1.msra.mxu0 %v766
    %970 = vmatprep.subr.mxu0 %v775
    %971 = vmatpush1.msra.mxu0 %v774
    %972 = vmatprep.subr.mxu0 %v783
    %973 = vmatpush1.msra.mxu0 %v782
    %974 = vmatprep.subr.mxu0 %v791
    %975 = vmatpush1.msra.mxu0 %v790
    %976 = vmatprep.subr.mxu0 %v799
    %977 = vmatpush1.msra.mxu0 %v798
    %978 = vmatprep.subr.mxu0 %v807
    %979 = vmatpush1.msra.mxu0 %v806
    %980 = vmatprep.subr.mxu0 %v815
    %981 = vmatpush1.msra.mxu0 %v814
    %982 = vmatprep.subr.mxu0 %v823
    %983 = vmatpush1.msra.mxu0 %v822
    %984 = vmatprep.subr.mxu0 %v831
    %985 = vmatpush1.msra.mxu0 %v830
    %986 = vmatprep.subr.mxu0 %v839
    %987 = vmatpush1.msra.mxu0 %v838
    %988 = vmatprep.subr.mxu0 %v847
    %989 = vmatpush1.msra.mxu0 %v846
    %990 = vmatprep.subr.mxu0 %v855
    %991 = vmatpush1.msra.mxu0 %v854
    %992 = vmatprep.subr.mxu0 %v863
    %993 = vmatpush1.msra.mxu0 %v862
    %994 = vmatprep.subr.mxu0 %v871
    %995 = vmatpush1.msra.mxu0 %v870
    %996 = vmatprep.subr.mxu0 %v879
    %997 = vmatpush1.msra.mxu0 %v878
    %998 = vmatprep.subr.mxu0 %v887
    %999 = vmatpush1.msra.mxu0 %v886
    %1000 = vmatprep.subr.mxu0 %v895
    %1001 = vmatpush1.msra.mxu0 %v894
    %1002 = vmatprep.subr.mxu0 %v903
    %1003 = vmatpush1.msra.mxu0 %v902
    %1004 = vmatprep.subr.mxu0 %v911
    %1005 = vmatpush1.msra.mxu0 %v910
    %1006 = vmatprep.subr.mxu0 %v919
    %1007 = vmatpush1.msra.mxu0 %v918
    %1008 = vmatprep.subr.mxu0 %v927
    %1009 = vmatpush1.msra.mxu0 %v926
    %1010 = vmatprep.subr.mxu0 %v935
    %1011 = vmatpush1.msra.mxu0 %v934
    %1012 = vmatprep.subr.mxu0 %v943
    %1013 = vmatpush1.msra.mxu0 %v942
    %1014 = vmatprep.mubr.f32.mxu0 %v579
    %1015 = vmatmul.mubr.f32.gmra.mrb[0].mxu0 %v564
    %v1016 = vpop.f32.mrb[0].mxu0
    %v1017 = vadd.f32 0.0, %v1016
    %v1018 = vpop.f32.mrb[0].mxu0
    %v1019 = vadd.f32 0.0, %v1018
    %1020 = vdwg.mxu0
    %1021 = vmatprep.subr.mxu0 %v697
    %1022 = vmatpush1.msra.mxu0 %v696
    %1023 = vmatprep.subr.mxu0 %v705
    %1024 = vmatpush1.msra.mxu0 %v704
    %1025 = vmatprep.subr.mxu0 %v713
    %1026 = vmatpush1.msra.mxu0 %v712
    %1027 = vmatprep.subr.mxu0 %v721
    %1028 = vmatpush1.msra.mxu0 %v720
    %1029 = vmatprep.subr.mxu0 %v729
    %1030 = vmatpush1.msra.mxu0 %v728
    %1031 = vmatprep.subr.mxu0 %v737
    %1032 = vmatpush1.msra.mxu0 %v736
    %1033 = vmatprep.subr.mxu0 %v745
    %1034 = vmatpush1.msra.mxu0 %v744
    %1035 = vmatprep.subr.mxu0 %v753
    %1036 = vmatpush1.msra.mxu0 %v752
    %1037 = vmatprep.subr.mxu0 %v761
    %1038 = vmatpush1.msra.mxu0 %v760
    %1039 = vmatprep.subr.mxu0 %v769
    %1040 = vmatpush1.msra.mxu0 %v768
    %1041 = vmatprep.subr.mxu0 %v777
    %1042 = vmatpush1.msra.mxu0 %v776
    %1043 = vmatprep.subr.mxu0 %v785
    %1044 = vmatpush1.msra.mxu0 %v784
    %1045 = vmatprep.subr.mxu0 %v793
    %1046 = vmatpush1.msra.mxu0 %v792
    %1047 = vmatprep.subr.mxu0 %v801
    %1048 = vmatpush1.msra.mxu0 %v800
    %1049 = vmatprep.subr.mxu0 %v809
    %1050 = vmatpush1.msra.mxu0 %v808
    %1051 = vmatprep.subr.mxu0 %v817
    %1052 = vmatpush1.msra.mxu0 %v816
    %1053 = vmatprep.subr.mxu0 %v825
    %1054 = vmatpush1.msra.mxu0 %v824
    %1055 = vmatprep.subr.mxu0 %v833
    %1056 = vmatpush1.msra.mxu0 %v832
    %1057 = vmatprep.subr.mxu0 %v841
    %1058 = vmatpush1.msra.mxu0 %v840
    %1059 = vmatprep.subr.mxu0 %v849
    %1060 = vmatpush1.msra.mxu0 %v848
    %1061 = vmatprep.subr.mxu0 %v857
    %1062 = vmatpush1.msra.mxu0 %v856
    %1063 = vmatprep.subr.mxu0 %v865
    %1064 = vmatpush1.msra.mxu0 %v864
    %1065 = vmatprep.subr.mxu0 %v873
    %1066 = vmatpush1.msra.mxu0 %v872
    %1067 = vmatprep.subr.mxu0 %v881
    %1068 = vmatpush1.msra.mxu0 %v880
    %1069 = vmatprep.subr.mxu0 %v889
    %1070 = vmatpush1.msra.mxu0 %v888
    %1071 = vmatprep.subr.mxu0 %v897
    %1072 = vmatpush1.msra.mxu0 %v896
    %1073 = vmatprep.subr.mxu0 %v905
    %1074 = vmatpush1.msra.mxu0 %v904
    %1075 = vmatprep.subr.mxu0 %v913
    %1076 = vmatpush1.msra.mxu0 %v912
    %1077 = vmatprep.subr.mxu0 %v921
    %1078 = vmatpush1.msra.mxu0 %v920
    %1079 = vmatprep.subr.mxu0 %v929
    %1080 = vmatpush1.msra.mxu0 %v928
    %1081 = vmatprep.subr.mxu0 %v937
    %1082 = vmatpush1.msra.mxu0 %v936
    %1083 = vmatprep.subr.mxu0 %v945
    %1084 = vmatpush1.msra.mxu0 %v944
    %1085 = vmatprep.mubr.f32.mxu0 %v579
    %1086 = vmatmul.mubr.f32.gmra.mrb[0].mxu0 %v564
    %v1087 = vpop.f32.mrb[0].mxu0
    %v1088 = vadd.f32 0.0, %v1087
    %v1089 = vpop.f32.mrb[0].mxu0
    %v1090 = vadd.f32 0.0, %v1089
    %1091 = vdwg.mxu0
    %1092 = vmatprep.subr.mxu0 %v699
    %1093 = vmatpush1.msra.mxu0 %v698
    %1094 = vmatprep.subr.mxu0 %v707
    %1095 = vmatpush1.msra.mxu0 %v706
    %1096 = vmatprep.subr.mxu0 %v715
    %1097 = vmatpush1.msra.mxu0 %v714
    %1098 = vmatprep.subr.mxu0 %v723
    %1099 = vmatpush1.msra.mxu0 %v722
    %1100 = vmatprep.subr.mxu0 %v731
    %1101 = vmatpush1.msra.mxu0 %v730
    %1102 = vmatprep.subr.mxu0 %v739
    %1103 = vmatpush1.msra.mxu0 %v738
    %1104 = vmatprep.subr.mxu0 %v747
    %1105 = vmatpush1.msra.mxu0 %v746
    %1106 = vmatprep.subr.mxu0 %v755
    %1107 = vmatpush1.msra.mxu0 %v754
    %1108 = vmatprep.subr.mxu0 %v763
    %1109 = vmatpush1.msra.mxu0 %v762
    %1110 = vmatprep.subr.mxu0 %v771
    %1111 = vmatpush1.msra.mxu0 %v770
    %1112 = vmatprep.subr.mxu0 %v779
    %1113 = vmatpush1.msra.mxu0 %v778
    %1114 = vmatprep.subr.mxu0 %v787
    %1115 = vmatpush1.msra.mxu0 %v786
    %1116 = vmatprep.subr.mxu0 %v795
    %1117 = vmatpush1.msra.mxu0 %v794
    %1118 = vmatprep.subr.mxu0 %v803
    %1119 = vmatpush1.msra.mxu0 %v802
    %1120 = vmatprep.subr.mxu0 %v811
    %1121 = vmatpush1.msra.mxu0 %v810
    %1122 = vmatprep.subr.mxu0 %v819
    %1123 = vmatpush1.msra.mxu0 %v818
    %1124 = vmatprep.subr.mxu0 %v827
    %1125 = vmatpush1.msra.mxu0 %v826
    %1126 = vmatprep.subr.mxu0 %v835
    %1127 = vmatpush1.msra.mxu0 %v834
    %1128 = vmatprep.subr.mxu0 %v843
    %1129 = vmatpush1.msra.mxu0 %v842
    %1130 = vmatprep.subr.mxu0 %v851
    %1131 = vmatpush1.msra.mxu0 %v850
    %1132 = vmatprep.subr.mxu0 %v859
    %1133 = vmatpush1.msra.mxu0 %v858
    %1134 = vmatprep.subr.mxu0 %v867
    %1135 = vmatpush1.msra.mxu0 %v866
    %1136 = vmatprep.subr.mxu0 %v875
    %1137 = vmatpush1.msra.mxu0 %v874
    %1138 = vmatprep.subr.mxu0 %v883
    %1139 = vmatpush1.msra.mxu0 %v882
    %1140 = vmatprep.subr.mxu0 %v891
    %1141 = vmatpush1.msra.mxu0 %v890
    %1142 = vmatprep.subr.mxu0 %v899
    %1143 = vmatpush1.msra.mxu0 %v898
    %1144 = vmatprep.subr.mxu0 %v907
    %1145 = vmatpush1.msra.mxu0 %v906
    %1146 = vmatprep.subr.mxu0 %v915
    %1147 = vmatpush1.msra.mxu0 %v914
    %1148 = vmatprep.subr.mxu0 %v923
    %1149 = vmatpush1.msra.mxu0 %v922
    %1150 = vmatprep.subr.mxu0 %v931
    %1151 = vmatpush1.msra.mxu0 %v930
    %1152 = vmatprep.subr.mxu0 %v939
    %1153 = vmatpush1.msra.mxu0 %v938
    %1154 = vmatprep.subr.mxu0 %v947
    %1155 = vmatpush1.msra.mxu0 %v946
    %1156 = vmatprep.mubr.f32.mxu0 %v579
    %1157 = vmatmul.mubr.f32.gmra.mrb[0].mxu0 %v564
    %v1158 = vpop.f32.mrb[0].mxu0
    %v1159 = vadd.f32 0.0, %v1158
    %v1160 = vpop.f32.mrb[0].mxu0
    %v1161 = vadd.f32 0.0, %v1160
    %1162 = vdwg.mxu0
    %1163 = vmatprep.subr.mxu0 %v701
    %1164 = vmatpush1.msra.mxu0 %v700
    %1165 = vmatprep.subr.mxu0 %v709
    %1166 = vmatpush1.msra.mxu0 %v708
    %1167 = vmatprep.subr.mxu0 %v717
    %1168 = vmatpush1.msra.mxu0 %v716
    %1169 = vmatprep.subr.mxu0 %v725
    %1170 = vmatpush1.msra.mxu0 %v724
    %1171 = vmatprep.subr.mxu0 %v733
    %1172 = vmatpush1.msra.mxu0 %v732
    %1173 = vmatprep.subr.mxu0 %v741
    %1174 = vmatpush1.msra.mxu0 %v740
    %1175 = vmatprep.subr.mxu0 %v749
    %1176 = vmatpush1.msra.mxu0 %v748
    %1177 = vmatprep.subr.mxu0 %v757
    %1178 = vmatpush1.msra.mxu0 %v756
    %1179 = vmatprep.subr.mxu0 %v765
    %1180 = vmatpush1.msra.mxu0 %v764
    %1181 = vmatprep.subr.mxu0 %v773
    %1182 = vmatpush1.msra.mxu0 %v772
    %1183 = vmatprep.subr.mxu0 %v781
    %1184 = vmatpush1.msra.mxu0 %v780
    %1185 = vmatprep.subr.mxu0 %v789
    %1186 = vmatpush1.msra.mxu0 %v788
    %1187 = vmatprep.subr.mxu0 %v797
    %1188 = vmatpush1.msra.mxu0 %v796
    %1189 = vmatprep.subr.mxu0 %v805
    %1190 = vmatpush1.msra.mxu0 %v804
    %1191 = vmatprep.subr.mxu0 %v813
    %1192 = vmatpush1.msra.mxu0 %v812
    %1193 = vmatprep.subr.mxu0 %v821
    %1194 = vmatpush1.msra.mxu0 %v820
    %1195 = vmatprep.subr.mxu0 %v829
    %1196 = vmatpush1.msra.mxu0 %v828
    %1197 = vmatprep.subr.mxu0 %v837
    %1198 = vmatpush1.msra.mxu0 %v836
    %1199 = vmatprep.subr.mxu0 %v845
    %1200 = vmatpush1.msra.mxu0 %v844
    %1201 = vmatprep.subr.mxu0 %v853
    %1202 = vmatpush1.msra.mxu0 %v852
    %1203 = vmatprep.subr.mxu0 %v861
    %1204 = vmatpush1.msra.mxu0 %v860
    %1205 = vmatprep.subr.mxu0 %v869
    %1206 = vmatpush1.msra.mxu0 %v868
    %1207 = vmatprep.subr.mxu0 %v877
    %1208 = vmatpush1.msra.mxu0 %v876
    %1209 = vmatprep.subr.mxu0 %v885
    %1210 = vmatpush1.msra.mxu0 %v884
    %1211 = vmatprep.subr.mxu0 %v893
    %1212 = vmatpush1.msra.mxu0 %v892
    %1213 = vmatprep.subr.mxu0 %v901
    %1214 = vmatpush1.msra.mxu0 %v900
    %1215 = vmatprep.subr.mxu0 %v909
    %1216 = vmatpush1.msra.mxu0 %v908
    %1217 = vmatprep.subr.mxu0 %v917
    %1218 = vmatpush1.msra.mxu0 %v916
    %1219 = vmatprep.subr.mxu0 %v925
    %1220 = vmatpush1.msra.mxu0 %v924
    %1221 = vmatprep.subr.mxu0 %v933
    %1222 = vmatpush1.msra.mxu0 %v932
    %1223 = vmatprep.subr.mxu0 %v941
    %1224 = vmatpush1.msra.mxu0 %v940
    %1225 = vmatprep.subr.mxu0 %v949
    %1226 = vmatpush1.msra.mxu0 %v948
    %1227 = vmatprep.mubr.f32.mxu0 %v579
    %1228 = vmatmul.mubr.f32.gmra.mrb[0].mxu0 %v564
    %v1229 = vpop.f32.mrb[0].mxu0
    %v1230 = vadd.f32 0.0, %v1229
    %v1231 = vpop.f32.mrb[0].mxu0
    %v1232 = vadd.f32 0.0, %v1231
    %1233 = vdwg.mxu0
    %v1234 = vmul.f32 %v1017, 0.015873017
    %v1235 = vmul.f32 %v1019, 0.015873017
    %v1236 = vmul.f32 %v1088, 0.015873017
    %v1237 = vmul.f32 %v1090, 0.015873017
    %v1238 = vmul.f32 %v1159, 0.015873017
    %v1239 = vmul.f32 %v1161, 0.015873017
    %v1240 = vmul.f32 %v1230, 0.015873017
    %v1241 = vmul.f32 %v1232, 0.015873017
    %v1242 = vsel %vm666, %v1234, -inf
    %v1243 = vsel %vm666, %v1235, -inf
    %v1244 = vsel %vm666, %v1236, -inf
    %v1245 = vsel %vm666, %v1237, -inf
    %v1246 = vsel %vm666, %v1238, -inf
    %v1247 = vmax.f32 %v1242, %v1246
    %v1248 = vsel %vm666, %v1239, -inf
    %v1249 = vmax.f32 %v1243, %v1248
    %v1250 = vsel %vm666, %v1240, -inf
    %v1251 = vmax.f32 %v1244, %v1250
    %v1252 = vsel %vm666, %v1241, -inf
    %v1253 = vmax.f32 %v1245, %v1252
    %v1254 = vmax.f32 %v1247, %v1249
    %v1255 = vmax.f32 %v1251, %v1253
    %v1256 = vmax.f32 %v1254, %v1255
    %1257 = vmax.xlane.f32.xlu0 %v1256
    %v1258 = vpop.xlane.xlu0 %1257
    %v1259 = vrcp.pop %v693
    %v1260 = vmul.f32 %v1258, %v1259
    %v1261 = vsub.f32 0.0, %v1260
    %vm1262 = vcmp.gt.f32.partialorder %v85, 0.0
    %v1263 = vsel %vm1262, %v85, 1.0
    %v1264 = vrcp.pop %v1263
    %v1265 = vmul.f32 %v1261, %v1264
    %v1266 = vsel %vm1262, %v1265, 0.0
    %1268 = vset.pattern.permute.xlu0 0
    %1269 = vperm.xlu0 %1268, %v1266
    %v1270 = vpop.permute.xlu0 %1269
    %v1271 = vlaneseq
    %v1272 = vand.u32 %v1271, 127
    %v1273 = vlaneseq
    %v1274 = vshrl.u32 %v1273, 7
    %v1275 = vsub.s32 %v1272, %v1274
    %v1276 = vrot.slane %v1270, %v1275
    %vm1278 = vcmask 24576
    %1279 = vst.msk [vmem:[#allocation8] sm:$0x1] %vm1278, %v1276
    // Predicated region
    $region30: #{tpu_custom_call.1} parent=1 // pred_check
      _
    $region31: #{tpu_custom_call.1} parent=1 // pred_check_branch
      %1281 = sbr.rel (0) target = $region33
    $region32: #{tpu_custom_call.1} parent=1 // pred_region
      %s1283 = ssub.s32 16, 16
      %1284 = vsyncadd [#allocation4], %s1283
      %s1286 = sshll.u32 [#allocation8], 4
      %s1287 = int_to_ptr.vmem [resolvable:$true] %s1286
      %1289 = dma.vmem_to_hbm [thread:$0]  %s1287, 16, %s4, [#allocation4]
    $region33: #{tpu_custom_call.1} parent=1 // pred_fallthru
      _
    // Predicated region
    $region34: #{tpu_custom_call.1} parent=1 // pred_check
      _
    $region35: #{tpu_custom_call.1} parent=1 // pred_check_branch
      %1291 = sbr.rel (0) target = $region37
    $region36: #{tpu_custom_call.1} parent=1 // pred_region
      %1292 = dma.done [#allocation4], 16
    $region37: #{tpu_custom_call.1} parent=1 // pred_fallthru
      _
    %1293 = vsyncpa [#allocation3], 1
    %1294 = vsyncpa [#allocation6], 1
    %1295 = vsyncpa [#allocation4], 1

</llo_original>
